<compile_context>
chip_gen: v6e
topology: v6e:2x2x1
jax: 0.10.0
libtpu: 0.0.40
codegen_flags: <defaults>
</compile_context>

<pallas_src>
import math
import numpy as np
import jax
import jax.numpy as jnp
from jax import lax
from jax.experimental import pallas as pl
from jax.experimental.pallas import tpu as pltpu


def _se_kernel(x_ref, w1_ref, w2t_ref, o_ref):
    # x_ref : (Bt, C, HW)      w1_ref : (hid, C) == fc1.weight
    # w2t_ref: (hid, C) == fc2.weight.T          o_ref : (Bt, C, HW)
    x = x_ref[...]                                          # (Bt, C, HW)
    hw = x.shape[2]

    # Global average pool over the spatial (lane) axis.
    pooled = jnp.sum(x, axis=2) * (1.0 / hw)                # (Bt, C)

    # FC1 (no bias) + ReLU: lane reduction over the 128-wide C axis (VPU + XLU).
    #   h[b, j] = relu( sum_c fc1.weight[j, c] * pooled[b, c] )
    h = jnp.maximum(
        jnp.sum(pooled[:, None, :] * w1_ref[...][None, :, :], axis=2), 0.0)  # (Bt, hid)

    # FC2 (no bias) + sigmoid: contraction over hid, output lane-dense over C.
    #   s[b, c] = sigmoid( sum_j fc2.weight[c, j] * h[b, j] )
    s = jax.nn.sigmoid(
        jnp.sum(h[:, :, None] * w2t_ref[...][None, :, :], axis=1))           # (Bt, C)

    # Channel-wise rescaling of the input (pure VPU, lane-dense unmasked stores).
    o_ref[...] = x * s[:, :, None]


def se_layer(x, fc1_w, fc2_w, *, donate_x: bool = False):
    """x: (B, C, H, W) f32; fc1_w: (hid, C); fc2_w: (C, hid). Returns (B, C, H, W)."""
    B, C, H, W = x.shape
    hid = fc1_w.shape[0]
    HW = H * W

    x2 = x.reshape(B, C, HW)          # contiguous reshape, no transpose
    w1 = fc1_w                        # (hid, C) -- native PyTorch layout, no .T
    w2t = fc2_w.T                     # (hid, C) -- 4 KiB, negligible

    # ---- tiling: batch Bt images per grid step -------------------------------
    per_img_bytes = C * HW * 4
    target_block_bytes = 2 << 20      # ~2 MiB blocks: >=85% of HBM roofline
    bt_cap = max(1, target_block_bytes // per_img_bytes)

    if B * per_img_bytes <= (1 << 20):
        # Tiny problem (e.g. B=2 here): a single block avoids all per-step
        # overhead and exposed prologue/epilogue DMAs.
        Bt = B
    else:
        # Keep >= 2 grid steps (megacore on v7x) while staying near the block
        # sweet spot; large B naturally gets >= 8 steps.
        Bt = max(1, min(bt_cap, pl.cdiv(B, 2)))

    grid_b = pl.cdiv(B, Bt)
    Bpad = grid_b * Bt
    if Bpad != B:
        # Zero-pad the ragged tail block (padded images pool to 0 -> scale 0.5 -> out 0).
        x2 = jnp.pad(x2, ((0, Bpad - B), (0, 0), (0, 0)))

    cost = pl.CostEstimate(
        flops=2 * B * C * HW + 4 * B * C * hid,
        transcendentals=B * C,
        bytes_accessed=2 * B * C * HW * 4 + 2 * hid * C * 4,
    )

    out = pl.pallas_call(
        _se_kernel,
        out_shape=jax.ShapeDtypeStruct((Bpad, C, HW), jnp.float32),
        grid_spec=pltpu.PrefetchScalarGridSpec(
            num_scalar_prefetch=0,
            grid=(grid_b,),
            in_specs=[
                pl.BlockSpec((Bt, C, HW), lambda b: (b, 0, 0)),
                pl.BlockSpec((hid, C), lambda b: (0, 0)),
                pl.BlockSpec((hid, C), lambda b: (0, 0)),
            ],
            out_specs=pl.BlockSpec((Bt, C, HW), lambda b: (b, 0, 0)),
        ),
        compiler_params=pltpu.CompilerParams(
            dimension_semantics=("parallel",)),
        cost_estimate=cost,
        input_output_aliases=({0: 0} if donate_x else {}),
    )(x2, w1, w2t)

    if Bpad != B:
        out = out[:B]
    return out.reshape(B, C, H, W)


def reference(x, fc1_w, fc2_w):
    # Pure-JAX reference matching the PyTorch SELayer forward (NCHW).
    pooled = jnp.mean(x, axis=(2, 3))                                       # (B, C)
    h = jnp.maximum(jnp.dot(pooled, fc1_w.T,
                            precision=lax.Precision.HIGHEST), 0.0)          # (B, hid)
    s = jax.nn.sigmoid(jnp.dot(h, fc2_w.T,
                               precision=lax.Precision.HIGHEST))            # (B, C)
    return x * s[:, :, None, None]


if __name__ == "__main__":
    B, C, H, W = 2, 128, 16, 16       # NCHW, same layout as the PyTorch module
    reduction = 16
    hid = C // reduction

    key = jax.random.PRNGKey(0)
    kx, k1, k2 = jax.random.split(key, 3)
    x = jax.random.normal(kx, (B, C, H, W), jnp.float32)
    fc1_w = jax.random.normal(k1, (hid, C), jnp.float32) / math.sqrt(C)     # Linear(C, C//r)
    fc2_w = jax.random.normal(k2, (C, hid), jnp.float32) / math.sqrt(hid)   # Linear(C//r, C)

    out = se_layer(x, fc1_w, fc2_w)
    out = jax.block_until_ready(out)

    ref = reference(x, fc1_w, fc2_w)
    np.testing.assert_allclose(np.asarray(out), np.asarray(ref),
                               rtol=1e-3, atol=1e-3)
    print("KERNEL_OK")
</pallas_src>

<mosaic_0001>
module attributes {stable_mosaic.version = 11 : i64} {
  func.func @_se_kernel(%arg0: i32, %arg1: memref<2x128x256xf32, #tpu.memory_space<vmem>>, %arg2: memref<8x128xf32, #tpu.memory_space<vmem>>, %arg3: memref<8x128xf32, #tpu.memory_space<vmem>>, %arg4: memref<2x128x256xf32, #tpu.memory_space<vmem>>) attributes {dimension_semantics = [#tpu.dimension_semantics<parallel>], iteration_bounds = array<i64: 1>, scalar_prefetch = 0 : i64, scratch_operands = 0 : i64, tpu.core_type = #tpu.core_type<tc>, window_params = [{transform_indices = @transform_0, window_bounds = array<i64: 2, 128, 256>}, {pipeline_mode = #tpu.pipeline_mode<synchronous>, transform_indices = @transform_1, window_bounds = array<i64: 8, 128>}, {pipeline_mode = #tpu.pipeline_mode<synchronous>, transform_indices = @transform_2, window_bounds = array<i64: 8, 128>}, {transform_indices = @transform_3, window_bounds = array<i64: 2, 128, 256>}]} {
    %c0 = arith.constant 0 : index
    %c0_0 = arith.constant 0 : index
    %c0_1 = arith.constant 0 : index
    %0 = vector.load %arg1[%c0, %c0_0, %c0_1] : memref<2x128x256xf32, #tpu.memory_space<vmem>>, vector<2x128x256xf32>
    %cst = arith.constant dense<0.000000e+00> : vector<2x128xf32>
    %1 = vector.multi_reduction <add>, %0, %cst [2] : vector<2x128x256xf32> to vector<2x128xf32>
    %cst_2 = arith.constant 3.906250e-03 : f32
    %2 = vector.broadcast %cst_2 : f32 to vector<2x128xf32>
    %3 = arith.mulf %1, %2 : vector<2x128xf32>
    %4 = vector.shape_cast %3 : vector<2x128xf32> to vector<2x1x128xf32>
    %c0_3 = arith.constant 0 : index
    %c0_4 = arith.constant 0 : index
    %5 = vector.load %arg2[%c0_3, %c0_4] : memref<8x128xf32, #tpu.memory_space<vmem>>, vector<8x128xf32>
    %6 = vector.shape_cast %5 : vector<8x128xf32> to vector<1x8x128xf32>
    %7 = vector.broadcast %4 : vector<2x1x128xf32> to vector<2x8x128xf32>
    %8 = vector.broadcast %6 : vector<1x8x128xf32> to vector<2x8x128xf32>
    %9 = arith.mulf %7, %8 : vector<2x8x128xf32>
    %cst_5 = arith.constant dense<0.000000e+00> : vector<2x8xf32>
    %10 = vector.multi_reduction <add>, %9, %cst_5 [2] : vector<2x8x128xf32> to vector<2x8xf32>
    %cst_6 = arith.constant 0.000000e+00 : f32
    %11 = vector.broadcast %cst_6 : f32 to vector<2x8xf32>
    %12 = arith.maximumf %10, %11 : vector<2x8xf32>
    %13 = vector.shape_cast %12 : vector<2x8xf32> to vector<2x8x1xf32>
    %c0_7 = arith.constant 0 : index
    %c0_8 = arith.constant 0 : index
    %14 = vector.load %arg3[%c0_7, %c0_8] : memref<8x128xf32, #tpu.memory_space<vmem>>, vector<8x128xf32>
    %15 = vector.shape_cast %14 : vector<8x128xf32> to vector<1x8x128xf32>
    %16 = vector.broadcast %13 : vector<2x8x1xf32> to vector<2x8x128xf32>
    %17 = vector.broadcast %15 : vector<1x8x128xf32> to vector<2x8x128xf32>
    %18 = arith.mulf %16, %17 : vector<2x8x128xf32>
    %cst_9 = arith.constant dense<0.000000e+00> : vector<2x128xf32>
    %19 = vector.multi_reduction <add>, %18, %cst_9 [1] : vector<2x8x128xf32> to vector<2x128xf32>
    %20 = arith.negf %19 : vector<2x128xf32>
    %21 = math.exp %20 : vector<2x128xf32>
    %cst_10 = arith.constant 1.000000e+00 : f32
    %22 = vector.broadcast %cst_10 : f32 to vector<2x128xf32>
    %23 = arith.addf %22, %21 : vector<2x128xf32>
    %24 = arith.divf %22, %23 : vector<2x128xf32>
    %25 = vector.shape_cast %24 : vector<2x128xf32> to vector<2x128x1xf32>
    %26 = vector.broadcast %25 : vector<2x128x1xf32> to vector<2x128x256xf32>
    %27 = arith.mulf %0, %26 : vector<2x128x256xf32>
    %c0_11 = arith.constant 0 : index
    %c0_12 = arith.constant 0 : index
    %c0_13 = arith.constant 0 : index
    %28 = vector.load %arg4[%c0_11, %c0_12, %c0_13] : memref<2x128x256xf32, #tpu.memory_space<vmem>>, vector<2x128x256xf32>
    tpu.vector_store %arg4[%c0_11, %c0_12, %c0_13], %27 {strides = array<i32>} : memref<2x128x256xf32, #tpu.memory_space<vmem>>, vector<2x128x256xf32>,
    return
  }
  func.func @transform_0(%arg0: i32) -> (i32, i32, i32) {
    %c0_i32 = arith.constant 0 : i32
    %c0_i32_0 = arith.constant 0 : i32
    %c0_i32_1 = arith.constant 0 : i32
    return %arg0, %c0_i32, %c0_i32_0 : i32, i32, i32
  }
  func.func @transform_1(%arg0: i32) -> (i32, i32) {
    %c0_i32 = arith.constant 0 : i32
    %c0_i32_0 = arith.constant 0 : i32
    %c0_i32_1 = arith.constant 0 : i32
    return %c0_i32, %c0_i32_0 : i32, i32
  }
  func.func @transform_2(%arg0: i32) -> (i32, i32) {
    %c0_i32 = arith.constant 0 : i32
    %c0_i32_0 = arith.constant 0 : i32
    %c0_i32_1 = arith.constant 0 : i32
    return %c0_i32, %c0_i32_0 : i32, i32
  }
  func.func @transform_3(%arg0: i32) -> (i32, i32, i32) {
    %c0_i32 = arith.constant 0 : i32
    %c0_i32_0 = arith.constant 0 : i32
    %c0_i32_1 = arith.constant 0 : i32
    return %arg0, %c0_i32, %c0_i32_0 : i32, i32, i32
  }
}

</mosaic_0001>

<llo_original>
// kernel: tpu_custom_call.1
$region0: #{tpu_custom_call.1}
  #allocation0 [shape = 'u32[]', space=smem, size = 0x4, offset = 0x4, fixed_abs, tag = 'smem constant byte address 0x4 - core index']
  #allocation1 [shape = 'u32[144,128]{1,0:T(1,128)}', space=vmem, size = 0x12000, scoped, tag = 'internal scratch']
  %s0 = inlined_call_operand.hbm [shape: f32[2,128,256], index: 0, kind: input, shape index: {}]
  %s1 = inlined_call_operand.hbm [shape: f32[8,128], index: 1, kind: input, shape index: {}]
  %s2 = inlined_call_operand.hbm [shape: f32[8,128], index: 2, kind: input, shape index: {}]
  %s3 = inlined_call_operand.hbm [shape: f32[2,128,256], index: 3, kind: output, shape index: {}]
  %s4 = sld [smem:[#allocation0]]
  $region34: #{tpu_custom_call.1} parent=0
    _
  %s6 = ssub.s32 1, %s4
  %s7 = scalar_select 0, %s6, %s4
  $region1: #{tpu_custom_call.1} parent=0
    #allocation2 [shape = 'u8[262144]{0}', space=vmem, size = 0x40000, scoped, tag = 'input window, operand 0, single buffered']
    #allocation3 [shape = 's32[1]{0}', space=sflag, size = 0x4, scoped, tag = 'scoped memory for tpu_custom_call.1']
    #allocation4 [shape = 's32[1]{0}', space=sflag, size = 0x4, scoped, tag = 'scoped memory for tpu_custom_call.1']
    #allocation5 [shape = 'u8[4096]{0}', space=vmem, size = 0x1000, scoped, tag = 'input window, operand 1, single buffered']
    #allocation6 [shape = 's32[1]{0}', space=sflag, size = 0x4, scoped, tag = 'scoped memory for tpu_custom_call.1']
    #allocation7 [shape = 'u8[4096]{0}', space=vmem, size = 0x1000, scoped, tag = 'input window, operand 2, single buffered']
    #allocation8 [shape = 'u8[262144]{0}', space=vmem, size = 0x40000, scoped, tag = 'output window, operand 0, single buffered']
    %8 = vsyncpa [#allocation3], 0
    %9 = vsyncpa [#allocation6], 0
    %10 = vsyncpa [#allocation4], 0
    // Predicated region
    $region2: #{tpu_custom_call.1} parent=1 // pred_check
      _
    $region3: #{tpu_custom_call.1} parent=1 // pred_check_branch
      %12 = sbr.rel (0) target = $region5
    $region4: #{tpu_custom_call.1} parent=1 // pred_region
      %s14 = ssub.s32 8192, 8192
      %15 = vsyncadd [#allocation3], %s14
      %s16 = sshll.u32 [#allocation2], 4
      %s17 = int_to_ptr.vmem [resolvable:$true] %s16
      %22 = dma.hbm_to_vmem [thread:$0]  %s0, 8192, %s17, [#allocation3], 256, 256, 16
    $region5: #{tpu_custom_call.1} parent=1 // pred_fallthru
      _
    // Predicated region
    $region6: #{tpu_custom_call.1} parent=1 // pred_check
      _
    $region7: #{tpu_custom_call.1} parent=1 // pred_check_branch
      %24 = sbr.rel (0) target = $region9
    $region8: #{tpu_custom_call.1} parent=1 // pred_region
      %s26 = ssub.s32 128, 128
      %27 = vsyncadd [#allocation6], %s26
      %s29 = sshll.u32 [#allocation5], 4
      %s30 = int_to_ptr.vmem [resolvable:$true] %s29
      %32 = dma.hbm_to_vmem [thread:$0]  %s1, 128, %s30, [#allocation6]
    $region9: #{tpu_custom_call.1} parent=1 // pred_fallthru
      _
    // Predicated region
    $region10: #{tpu_custom_call.1} parent=1 // pred_check
      _
    $region11: #{tpu_custom_call.1} parent=1 // pred_check_branch
      %34 = sbr.rel (0) target = $region13
    $region12: #{tpu_custom_call.1} parent=1 // pred_region
      %s36 = ssub.s32 128, 128
      %37 = vsyncadd [#allocation6], %s36
      %s39 = sshll.u32 [#allocation7], 4
      %s40 = int_to_ptr.vmem [resolvable:$true] %s39
      %42 = dma.hbm_to_vmem [thread:$0]  %s2, 128, %s40, [#allocation6]
    $region13: #{tpu_custom_call.1} parent=1 // pred_fallthru
      _
    // Predicated region
    $region14: #{tpu_custom_call.1} parent=1 // pred_check
      _
    $region15: #{tpu_custom_call.1} parent=1 // pred_check_branch
      %44 = sbr.rel (0) target = $region17
    $region16: #{tpu_custom_call.1} parent=1 // pred_region
      %45 = dma.done [#allocation3], 8192
    $region17: #{tpu_custom_call.1} parent=1 // pred_fallthru
      _
    // Predicated region
    $region18: #{tpu_custom_call.1} parent=1 // pred_check
      _
    $region19: #{tpu_custom_call.1} parent=1 // pred_check_branch
      %47 = sbr.rel (0) target = $region21
    $region20: #{tpu_custom_call.1} parent=1 // pred_region
      %48 = dma.done [#allocation6], 128
    $region21: #{tpu_custom_call.1} parent=1 // pred_fallthru
      _
    // Predicated region
    $region22: #{tpu_custom_call.1} parent=1 // pred_check
      _
    $region23: #{tpu_custom_call.1} parent=1 // pred_check_branch
      %50 = sbr.rel (0) target = $region25
    $region24: #{tpu_custom_call.1} parent=1 // pred_region
      %51 = dma.done [#allocation6], 128
    $region25: #{tpu_custom_call.1} parent=1 // pred_fallthru
      _
    %v52 = vld [vmem:[#allocation2] sm:$0xff]
    %v53 = vld [vmem:[#allocation2 + $0x8] sm:$0xff]
    %v54 = vld [vmem:[#allocation2 + $0x10] sm:$0xff]
    %v55 = vld [vmem:[#allocation2 + $0x18] sm:$0xff]
    %v56 = vld [vmem:[#allocation2 + $0x20] sm:$0xff]
    %v57 = vld [vmem:[#allocation2 + $0x28] sm:$0xff]
    %v58 = vld [vmem:[#allocation2 + $0x30] sm:$0xff]
    %v59 = vld [vmem:[#allocation2 + $0x38] sm:$0xff]
    %v60 = vld [vmem:[#allocation2 + $0x40] sm:$0xff]
    %v61 = vld [vmem:[#allocation2 + $0x48] sm:$0xff]
    %v62 = vld [vmem:[#allocation2 + $0x50] sm:$0xff]
    %v63 = vld [vmem:[#allocation2 + $0x58] sm:$0xff]
    %v64 = vld [vmem:[#allocation2 + $0x60] sm:$0xff]
    %v65 = vld [vmem:[#allocation2 + $0x68] sm:$0xff]
    %v66 = vld [vmem:[#allocation2 + $0x70] sm:$0xff]
    %v67 = vld [vmem:[#allocation2 + $0x78] sm:$0xff]
    %v68 = vld [vmem:[#allocation2 + $0x80] sm:$0xff]
    %v69 = vld [vmem:[#allocation2 + $0x88] sm:$0xff]
    %v70 = vld [vmem:[#allocation2 + $0x90] sm:$0xff]
    %v71 = vld [vmem:[#allocation2 + $0x98] sm:$0xff]
    %v72 = vld [vmem:[#allocation2 + $0xa0] sm:$0xff]
    %v73 = vld [vmem:[#allocation2 + $0xa8] sm:$0xff]
    %v74 = vld [vmem:[#allocation2 + $0xb0] sm:$0xff]
    %v75 = vld [vmem:[#allocation2 + $0xb8] sm:$0xff]
    %v76 = vld [vmem:[#allocation2 + $0xc0] sm:$0xff]
    %v77 = vld [vmem:[#allocation2 + $0xc8] sm:$0xff]
    %v78 = vld [vmem:[#allocation2 + $0xd0] sm:$0xff]
    %v79 = vld [vmem:[#allocation2 + $0xd8] sm:$0xff]
    %v80 = vld [vmem:[#allocation2 + $0xe0] sm:$0xff]
    %v81 = vld [vmem:[#allocation2 + $0xe8] sm:$0xff]
    %v82 = vld [vmem:[#allocation2 + $0xf0] sm:$0xff]
    %v83 = vld [vmem:[#allocation2 + $0xf8] sm:$0xff]
    %v84 = vld [vmem:[#allocation2 + $0x100] sm:$0xff]
    %v85 = vld [vmem:[#allocation2 + $0x108] sm:$0xff]
    %v86 = vld [vmem:[#allocation2 + $0x110] sm:$0xff]
    %v87 = vld [vmem:[#allocation2 + $0x118] sm:$0xff]
    %v88 = vld [vmem:[#allocation2 + $0x120] sm:$0xff]
    %v89 = vld [vmem:[#allocation2 + $0x128] sm:$0xff]
    %v90 = vld [vmem:[#allocation2 + $0x130] sm:$0xff]
    %v91 = vld [vmem:[#allocation2 + $0x138] sm:$0xff]
    %v92 = vld [vmem:[#allocation2 + $0x140] sm:$0xff]
    %v93 = vld [vmem:[#allocation2 + $0x148] sm:$0xff]
    %v94 = vld [vmem:[#allocation2 + $0x150] sm:$0xff]
    %v95 = vld [vmem:[#allocation2 + $0x158] sm:$0xff]
    %v96 = vld [vmem:[#allocation2 + $0x160] sm:$0xff]
    %v97 = vld [vmem:[#allocation2 + $0x168] sm:$0xff]
    %v98 = vld [vmem:[#allocation2 + $0x170] sm:$0xff]
    %v99 = vld [vmem:[#allocation2 + $0x178] sm:$0xff]
    %v100 = vld [vmem:[#allocation2 + $0x180] sm:$0xff]
    %v101 = vld [vmem:[#allocation2 + $0x188] sm:$0xff]
    %v102 = vld [vmem:[#allocation2 + $0x190] sm:$0xff]
    %v103 = vld [vmem:[#allocation2 + $0x198] sm:$0xff]
    %v104 = vld [vmem:[#allocation2 + $0x1a0] sm:$0xff]
    %v105 = vld [vmem:[#allocation2 + $0x1a8] sm:$0xff]
    %v106 = vld [vmem:[#allocation2 + $0x1b0] sm:$0xff]
    %v107 = vld [vmem:[#allocation2 + $0x1b8] sm:$0xff]
    %v108 = vld [vmem:[#allocation2 + $0x1c0] sm:$0xff]
    %v109 = vld [vmem:[#allocation2 + $0x1c8] sm:$0xff]
    %v110 = vld [vmem:[#allocation2 + $0x1d0] sm:$0xff]
    %v111 = vld [vmem:[#allocation2 + $0x1d8] sm:$0xff]
    %v112 = vld [vmem:[#allocation2 + $0x1e0] sm:$0xff]
    %v113 = vld [vmem:[#allocation2 + $0x1e8] sm:$0xff]
    %v114 = vld [vmem:[#allocation2 + $0x1f0] sm:$0xff]
    %v115 = vld [vmem:[#allocation2 + $0x1f8] sm:$0xff]
    %v116 = vadd.f32 %v52, %v53
    %117 = vadd.xlane.f32.xlu0 %v116
    %v118 = vpop.xlane.xlu0 %117
    %v119 = vadd.f32 %v54, %v55
    %120 = vadd.xlane.f32.xlu0 %v119
    %v121 = vpop.xlane.xlu0 %120
    %v122 = vadd.f32 %v56, %v57
    %123 = vadd.xlane.f32.xlu0 %v122
    %v124 = vpop.xlane.xlu0 %123
    %v125 = vadd.f32 %v58, %v59
    %126 = vadd.xlane.f32.xlu0 %v125
    %v127 = vpop.xlane.xlu0 %126
    %v128 = vadd.f32 %v60, %v61
    %129 = vadd.xlane.f32.xlu0 %v128
    %v130 = vpop.xlane.xlu0 %129
    %v131 = vadd.f32 %v62, %v63
    %132 = vadd.xlane.f32.xlu0 %v131
    %v133 = vpop.xlane.xlu0 %132
    %v134 = vadd.f32 %v64, %v65
    %135 = vadd.xlane.f32.xlu0 %v134
    %v136 = vpop.xlane.xlu0 %135
    %v137 = vadd.f32 %v66, %v67
    %138 = vadd.xlane.f32.xlu0 %v137
    %v139 = vpop.xlane.xlu0 %138
    %v140 = vadd.f32 %v68, %v69
    %141 = vadd.xlane.f32.xlu0 %v140
    %v142 = vpop.xlane.xlu0 %141
    %v143 = vadd.f32 %v70, %v71
    %144 = vadd.xlane.f32.xlu0 %v143
    %v145 = vpop.xlane.xlu0 %144
    %v146 = vadd.f32 %v72, %v73
    %147 = vadd.xlane.f32.xlu0 %v146
    %v148 = vpop.xlane.xlu0 %147
    %v149 = vadd.f32 %v74, %v75
    %150 = vadd.xlane.f32.xlu0 %v149
    %v151 = vpop.xlane.xlu0 %150
    %v152 = vadd.f32 %v76, %v77
    %153 = vadd.xlane.f32.xlu0 %v152
    %v154 = vpop.xlane.xlu0 %153
    %v155 = vadd.f32 %v78, %v79
    %156 = vadd.xlane.f32.xlu0 %v155
    %v157 = vpop.xlane.xlu0 %156
    %v158 = vadd.f32 %v80, %v81
    %159 = vadd.xlane.f32.xlu0 %v158
    %v160 = vpop.xlane.xlu0 %159
    %v161 = vadd.f32 %v82, %v83
    %162 = vadd.xlane.f32.xlu0 %v161
    %v163 = vpop.xlane.xlu0 %162
    %v164 = vadd.f32 %v84, %v85
    %165 = vadd.xlane.f32.xlu0 %v164
    %v166 = vpop.xlane.xlu0 %165
    %v167 = vadd.f32 %v86, %v87
    %168 = vadd.xlane.f32.xlu0 %v167
    %v169 = vpop.xlane.xlu0 %168
    %v170 = vadd.f32 %v88, %v89
    %171 = vadd.xlane.f32.xlu0 %v170
    %v172 = vpop.xlane.xlu0 %171
    %v173 = vadd.f32 %v90, %v91
    %174 = vadd.xlane.f32.xlu0 %v173
    %v175 = vpop.xlane.xlu0 %174
    %v176 = vadd.f32 %v92, %v93
    %177 = vadd.xlane.f32.xlu0 %v176
    %v178 = vpop.xlane.xlu0 %177
    %v179 = vadd.f32 %v94, %v95
    %180 = vadd.xlane.f32.xlu0 %v179
    %v181 = vpop.xlane.xlu0 %180
    %v182 = vadd.f32 %v96, %v97
    %183 = vadd.xlane.f32.xlu0 %v182
    %v184 = vpop.xlane.xlu0 %183
    %v185 = vadd.f32 %v98, %v99
    %186 = vadd.xlane.f32.xlu0 %v185
    %v187 = vpop.xlane.xlu0 %186
    %v188 = vadd.f32 %v100, %v101
    %189 = vadd.xlane.f32.xlu0 %v188
    %v190 = vpop.xlane.xlu0 %189
    %v191 = vadd.f32 %v102, %v103
    %192 = vadd.xlane.f32.xlu0 %v191
    %v193 = vpop.xlane.xlu0 %192
    %v194 = vadd.f32 %v104, %v105
    %195 = vadd.xlane.f32.xlu0 %v194
    %v196 = vpop.xlane.xlu0 %195
    %v197 = vadd.f32 %v106, %v107
    %198 = vadd.xlane.f32.xlu0 %v197
    %v199 = vpop.xlane.xlu0 %198
    %v200 = vadd.f32 %v108, %v109
    %201 = vadd.xlane.f32.xlu0 %v200
    %v202 = vpop.xlane.xlu0 %201
    %v203 = vadd.f32 %v110, %v111
    %204 = vadd.xlane.f32.xlu0 %v203
    %v205 = vpop.xlane.xlu0 %204
    %v206 = vadd.f32 %v112, %v113
    %207 = vadd.xlane.f32.xlu0 %v206
    %v208 = vpop.xlane.xlu0 %207
    %v209 = vadd.f32 %v114, %v115
    %210 = vadd.xlane.f32.xlu0 %v209
    %v211 = vpop.xlane.xlu0 %210
    %v212 = vmul.f32 %v118, 0.00390625
    %v213 = vmul.f32 %v121, 0.00390625
    %v214 = vmul.f32 %v124, 0.00390625
    %v215 = vmul.f32 %v127, 0.00390625
    %v216 = vmul.f32 %v130, 0.00390625
    %v217 = vmul.f32 %v133, 0.00390625
    %v218 = vmul.f32 %v136, 0.00390625
    %v219 = vmul.f32 %v139, 0.00390625
    %v220 = vmul.f32 %v142, 0.00390625
    %v221 = vmul.f32 %v145, 0.00390625
    %v222 = vmul.f32 %v148, 0.00390625
    %v223 = vmul.f32 %v151, 0.00390625
    %v224 = vmul.f32 %v154, 0.00390625
    %v225 = vmul.f32 %v157, 0.00390625
    %v226 = vmul.f32 %v160, 0.00390625
    %v227 = vmul.f32 %v163, 0.00390625
    %v228 = vmul.f32 %v166, 0.00390625
    %v229 = vmul.f32 %v169, 0.00390625
    %v230 = vmul.f32 %v172, 0.00390625
    %v231 = vmul.f32 %v175, 0.00390625
    %v232 = vmul.f32 %v178, 0.00390625
    %v233 = vmul.f32 %v181, 0.00390625
    %v234 = vmul.f32 %v184, 0.00390625
    %v235 = vmul.f32 %v187, 0.00390625
    %v236 = vmul.f32 %v190, 0.00390625
    %v237 = vmul.f32 %v193, 0.00390625
    %v238 = vmul.f32 %v196, 0.00390625
    %v239 = vmul.f32 %v199, 0.00390625
    %v240 = vmul.f32 %v202, 0.00390625
    %v241 = vmul.f32 %v205, 0.00390625
    %v242 = vmul.f32 %v208, 0.00390625
    %v243 = vmul.f32 %v211, 0.00390625
    %v244 = vld [vmem:[#allocation5] sm:$0xff]
    %v246 = vlaneseq
    %v247 = vshrl.u32 %v246, 7
    %v248 = vsub.s32 0, %v247
    %v249 = vrot.slane %v244, %v248
    %251 = vbcast.lane.b32.xlu0 %v249, 256
    %v252 = vpop.permute.xlu0 %251
    %s254 = sor.u32 256, 8
    %255 = vbcast.lane.b32.xlu0 %v249, %s254
    %v256 = vpop.permute.xlu0 %255
    %s258 = sor.u32 256, 16
    %259 = vbcast.lane.b32.xlu0 %v249, %s258
    %v260 = vpop.permute.xlu0 %259
    %s262 = sor.u32 256, 24
    %263 = vbcast.lane.b32.xlu0 %v249, %s262
    %v264 = vpop.permute.xlu0 %263
    %s266 = sor.u32 256, 32
    %267 = vbcast.lane.b32.xlu0 %v249, %s266
    %v268 = vpop.permute.xlu0 %267
    %s270 = sor.u32 256, 40
    %271 = vbcast.lane.b32.xlu0 %v249, %s270
    %v272 = vpop.permute.xlu0 %271
    %s274 = sor.u32 256, 48
    %275 = vbcast.lane.b32.xlu0 %v249, %s274
    %v276 = vpop.permute.xlu0 %275
    %s278 = sor.u32 256, 56
    %279 = vbcast.lane.b32.xlu0 %v249, %s278
    %v280 = vpop.permute.xlu0 %279
    %s282 = sor.u32 256, 64
    %283 = vbcast.lane.b32.xlu0 %v249, %s282
    %v284 = vpop.permute.xlu0 %283
    %s286 = sor.u32 256, 72
    %287 = vbcast.lane.b32.xlu0 %v249, %s286
    %v288 = vpop.permute.xlu0 %287
    %s290 = sor.u32 256, 80
    %291 = vbcast.lane.b32.xlu0 %v249, %s290
    %v292 = vpop.permute.xlu0 %291
    %s294 = sor.u32 256, 88
    %295 = vbcast.lane.b32.xlu0 %v249, %s294
    %v296 = vpop.permute.xlu0 %295
    %s298 = sor.u32 256, 96
    %299 = vbcast.lane.b32.xlu0 %v249, %s298
    %v300 = vpop.permute.xlu0 %299
    %s302 = sor.u32 256, 104
    %303 = vbcast.lane.b32.xlu0 %v249, %s302
    %v304 = vpop.permute.xlu0 %303
    %s306 = sor.u32 256, 112
    %307 = vbcast.lane.b32.xlu0 %v249, %s306
    %v308 = vpop.permute.xlu0 %307
    %s310 = sor.u32 256, 120
    %311 = vbcast.lane.b32.xlu0 %v249, %s310
    %v312 = vpop.permute.xlu0 %311
    %v313 = vlaneseq
    %v314 = vshrl.u32 %v313, 7
    %v315 = vsub.s32 1, %v314
    %v316 = vrot.slane %v244, %v315
    %318 = vbcast.lane.b32.xlu0 %v316, 256
    %v319 = vpop.permute.xlu0 %318
    %s321 = sor.u32 256, 8
    %322 = vbcast.lane.b32.xlu0 %v316, %s321
    %v323 = vpop.permute.xlu0 %322
    %s325 = sor.u32 256, 16
    %326 = vbcast.lane.b32.xlu0 %v316, %s325
    %v327 = vpop.permute.xlu0 %326
    %s329 = sor.u32 256, 24
    %330 = vbcast.lane.b32.xlu0 %v316, %s329
    %v331 = vpop.permute.xlu0 %330
    %s333 = sor.u32 256, 32
    %334 = vbcast.lane.b32.xlu0 %v316, %s333
    %v335 = vpop.permute.xlu0 %334
    %s337 = sor.u32 256, 40
    %338 = vbcast.lane.b32.xlu0 %v316, %s337
    %v339 = vpop.permute.xlu0 %338
    %s341 = sor.u32 256, 48
    %342 = vbcast.lane.b32.xlu0 %v316, %s341
    %v343 = vpop.permute.xlu0 %342
    %s345 = sor.u32 256, 56
    %346 = vbcast.lane.b32.xlu0 %v316, %s345
    %v347 = vpop.permute.xlu0 %346
    %s349 = sor.u32 256, 64
    %350 = vbcast.lane.b32.xlu0 %v316, %s349
    %v351 = vpop.permute.xlu0 %350
    %s353 = sor.u32 256, 72
    %354 = vbcast.lane.b32.xlu0 %v316, %s353
    %v355 = vpop.permute.xlu0 %354
    %s357 = sor.u32 256, 80
    %358 = vbcast.lane.b32.xlu0 %v316, %s357
    %v359 = vpop.permute.xlu0 %358
    %s361 = sor.u32 256, 88
    %362 = vbcast.lane.b32.xlu0 %v316, %s361
    %v363 = vpop.permute.xlu0 %362
    %s365 = sor.u32 256, 96
    %366 = vbcast.lane.b32.xlu0 %v316, %s365
    %v367 = vpop.permute.xlu0 %366
    %s369 = sor.u32 256, 104
    %370 = vbcast.lane.b32.xlu0 %v316, %s369
    %v371 = vpop.permute.xlu0 %370
    %s373 = sor.u32 256, 112
    %374 = vbcast.lane.b32.xlu0 %v316, %s373
    %v375 = vpop.permute.xlu0 %374
    %s377 = sor.u32 256, 120
    %378 = vbcast.lane.b32.xlu0 %v316, %s377
    %v379 = vpop.permute.xlu0 %378
    %v380 = vlaneseq
    %v381 = vshrl.u32 %v380, 7
    %v382 = vsub.s32 2, %v381
    %v383 = vrot.slane %v244, %v382
    %385 = vbcast.lane.b32.xlu0 %v383, 256
    %v386 = vpop.permute.xlu0 %385
    %s388 = sor.u32 256, 8
    %389 = vbcast.lane.b32.xlu0 %v383, %s388
    %v390 = vpop.permute.xlu0 %389
    %s392 = sor.u32 256, 16
    %393 = vbcast.lane.b32.xlu0 %v383, %s392
    %v394 = vpop.permute.xlu0 %393
    %s396 = sor.u32 256, 24
    %397 = vbcast.lane.b32.xlu0 %v383, %s396
    %v398 = vpop.permute.xlu0 %397
    %s400 = sor.u32 256, 32
    %401 = vbcast.lane.b32.xlu0 %v383, %s400
    %v402 = vpop.permute.xlu0 %401
    %s404 = sor.u32 256, 40
    %405 = vbcast.lane.b32.xlu0 %v383, %s404
    %v406 = vpop.permute.xlu0 %405
    %s408 = sor.u32 256, 48
    %409 = vbcast.lane.b32.xlu0 %v383, %s408
    %v410 = vpop.permute.xlu0 %409
    %s412 = sor.u32 256, 56
    %413 = vbcast.lane.b32.xlu0 %v383, %s412
    %v414 = vpop.permute.xlu0 %413
    %s416 = sor.u32 256, 64
    %417 = vbcast.lane.b32.xlu0 %v383, %s416
    %v418 = vpop.permute.xlu0 %417
    %s420 = sor.u32 256, 72
    %421 = vbcast.lane.b32.xlu0 %v383, %s420
    %v422 = vpop.permute.xlu0 %421
    %s424 = sor.u32 256, 80
    %425 = vbcast.lane.b32.xlu0 %v383, %s424
    %v426 = vpop.permute.xlu0 %425
    %s428 = sor.u32 256, 88
    %429 = vbcast.lane.b32.xlu0 %v383, %s428
    %v430 = vpop.permute.xlu0 %429
    %s432 = sor.u32 256, 96
    %433 = vbcast.lane.b32.xlu0 %v383, %s432
    %v434 = vpop.permute.xlu0 %433
    %s436 = sor.u32 256, 104
    %437 = vbcast.lane.b32.xlu0 %v383, %s436
    %v438 = vpop.permute.xlu0 %437
    %s440 = sor.u32 256, 112
    %441 = vbcast.lane.b32.xlu0 %v383, %s440
    %v442 = vpop.permute.xlu0 %441
    %s444 = sor.u32 256, 120
    %445 = vbcast.lane.b32.xlu0 %v383, %s444
    %v446 = vpop.permute.xlu0 %445
    %v447 = vlaneseq
    %v448 = vshrl.u32 %v447, 7
    %v449 = vsub.s32 3, %v448
    %v450 = vrot.slane %v244, %v449
    %452 = vbcast.lane.b32.xlu0 %v450, 256
    %v453 = vpop.permute.xlu0 %452
    %s455 = sor.u32 256, 8
    %456 = vbcast.lane.b32.xlu0 %v450, %s455
    %v457 = vpop.permute.xlu0 %456
    %s459 = sor.u32 256, 16
    %460 = vbcast.lane.b32.xlu0 %v450, %s459
    %v461 = vpop.permute.xlu0 %460
    %s463 = sor.u32 256, 24
    %464 = vbcast.lane.b32.xlu0 %v450, %s463
    %v465 = vpop.permute.xlu0 %464
    %s467 = sor.u32 256, 32
    %468 = vbcast.lane.b32.xlu0 %v450, %s467
    %v469 = vpop.permute.xlu0 %468
    %s471 = sor.u32 256, 40
    %472 = vbcast.lane.b32.xlu0 %v450, %s471
    %v473 = vpop.permute.xlu0 %472
    %s475 = sor.u32 256, 48
    %476 = vbcast.lane.b32.xlu0 %v450, %s475
    %v477 = vpop.permute.xlu0 %476
    %s479 = sor.u32 256, 56
    %480 = vbcast.lane.b32.xlu0 %v450, %s479
    %v481 = vpop.permute.xlu0 %480
    %s483 = sor.u32 256, 64
    %484 = vbcast.lane.b32.xlu0 %v450, %s483
    %v485 = vpop.permute.xlu0 %484
    %s487 = sor.u32 256, 72
    %488 = vbcast.lane.b32.xlu0 %v450, %s487
    %v489 = vpop.permute.xlu0 %488
    %s491 = sor.u32 256, 80
    %492 = vbcast.lane.b32.xlu0 %v450, %s491
    %v493 = vpop.permute.xlu0 %492
    %s495 = sor.u32 256, 88
    %496 = vbcast.lane.b32.xlu0 %v450, %s495
    %v497 = vpop.permute.xlu0 %496
    %s499 = sor.u32 256, 96
    %500 = vbcast.lane.b32.xlu0 %v450, %s499
    %v501 = vpop.permute.xlu0 %500
    %s503 = sor.u32 256, 104
    %504 = vbcast.lane.b32.xlu0 %v450, %s503
    %v505 = vpop.permute.xlu0 %504
    %s507 = sor.u32 256, 112
    %508 = vbcast.lane.b32.xlu0 %v450, %s507
    %v509 = vpop.permute.xlu0 %508
    %s511 = sor.u32 256, 120
    %512 = vbcast.lane.b32.xlu0 %v450, %s511
    %v513 = vpop.permute.xlu0 %512
    %v514 = vlaneseq
    %v515 = vshrl.u32 %v514, 7
    %v516 = vsub.s32 4, %v515
    %v517 = vrot.slane %v244, %v516
    %519 = vbcast.lane.b32.xlu0 %v517, 256
    %v520 = vpop.permute.xlu0 %519
    %s522 = sor.u32 256, 8
    %523 = vbcast.lane.b32.xlu0 %v517, %s522
    %v524 = vpop.permute.xlu0 %523
    %s526 = sor.u32 256, 16
    %527 = vbcast.lane.b32.xlu0 %v517, %s526
    %v528 = vpop.permute.xlu0 %527
    %s530 = sor.u32 256, 24
    %531 = vbcast.lane.b32.xlu0 %v517, %s530
    %v532 = vpop.permute.xlu0 %531
    %s534 = sor.u32 256, 32
    %535 = vbcast.lane.b32.xlu0 %v517, %s534
    %v536 = vpop.permute.xlu0 %535
    %s538 = sor.u32 256, 40
    %539 = vbcast.lane.b32.xlu0 %v517, %s538
    %v540 = vpop.permute.xlu0 %539
    %s542 = sor.u32 256, 48
    %543 = vbcast.lane.b32.xlu0 %v517, %s542
    %v544 = vpop.permute.xlu0 %543
    %s546 = sor.u32 256, 56
    %547 = vbcast.lane.b32.xlu0 %v517, %s546
    %v548 = vpop.permute.xlu0 %547
    %s550 = sor.u32 256, 64
    %551 = vbcast.lane.b32.xlu0 %v517, %s550
    %v552 = vpop.permute.xlu0 %551
    %s554 = sor.u32 256, 72
    %555 = vbcast.lane.b32.xlu0 %v517, %s554
    %v556 = vpop.permute.xlu0 %555
    %s558 = sor.u32 256, 80
    %559 = vbcast.lane.b32.xlu0 %v517, %s558
    %v560 = vpop.permute.xlu0 %559
    %s562 = sor.u32 256, 88
    %563 = vbcast.lane.b32.xlu0 %v517, %s562
    %v564 = vpop.permute.xlu0 %563
    %s566 = sor.u32 256, 96
    %567 = vbcast.lane.b32.xlu0 %v517, %s566
    %v568 = vpop.permute.xlu0 %567
    %s570 = sor.u32 256, 104
    %571 = vbcast.lane.b32.xlu0 %v517, %s570
    %v572 = vpop.permute.xlu0 %571
    %s574 = sor.u32 256, 112
    %575 = vbcast.lane.b32.xlu0 %v517, %s574
    %v576 = vpop.permute.xlu0 %575
    %s578 = sor.u32 256, 120
    %579 = vbcast.lane.b32.xlu0 %v517, %s578
    %v580 = vpop.permute.xlu0 %579
    %v581 = vlaneseq
    %v582 = vshrl.u32 %v581, 7
    %v583 = vsub.s32 5, %v582
    %v584 = vrot.slane %v244, %v583
    %586 = vbcast.lane.b32.xlu0 %v584, 256
    %v587 = vpop.permute.xlu0 %586
    %s589 = sor.u32 256, 8
    %590 = vbcast.lane.b32.xlu0 %v584, %s589
    %v591 = vpop.permute.xlu0 %590
    %s593 = sor.u32 256, 16
    %594 = vbcast.lane.b32.xlu0 %v584, %s593
    %v595 = vpop.permute.xlu0 %594
    %s597 = sor.u32 256, 24
    %598 = vbcast.lane.b32.xlu0 %v584, %s597
    %v599 = vpop.permute.xlu0 %598
    %s601 = sor.u32 256, 32
    %602 = vbcast.lane.b32.xlu0 %v584, %s601
    %v603 = vpop.permute.xlu0 %602
    %s605 = sor.u32 256, 40
    %606 = vbcast.lane.b32.xlu0 %v584, %s605
    %v607 = vpop.permute.xlu0 %606
    %s609 = sor.u32 256, 48
    %610 = vbcast.lane.b32.xlu0 %v584, %s609
    %v611 = vpop.permute.xlu0 %610
    %s613 = sor.u32 256, 56
    %614 = vbcast.lane.b32.xlu0 %v584, %s613
    %v615 = vpop.permute.xlu0 %614
    %s617 = sor.u32 256, 64
    %618 = vbcast.lane.b32.xlu0 %v584, %s617
    %v619 = vpop.permute.xlu0 %618
    %s621 = sor.u32 256, 72
    %622 = vbcast.lane.b32.xlu0 %v584, %s621
    %v623 = vpop.permute.xlu0 %622
    %s625 = sor.u32 256, 80
    %626 = vbcast.lane.b32.xlu0 %v584, %s625
    %v627 = vpop.permute.xlu0 %626
    %s629 = sor.u32 256, 88
    %630 = vbcast.lane.b32.xlu0 %v584, %s629
    %v631 = vpop.permute.xlu0 %630
    %s633 = sor.u32 256, 96
    %634 = vbcast.lane.b32.xlu0 %v584, %s633
    %v635 = vpop.permute.xlu0 %634
    %s637 = sor.u32 256, 104
    %638 = vbcast.lane.b32.xlu0 %v584, %s637
    %v639 = vpop.permute.xlu0 %638
    %s641 = sor.u32 256, 112
    %642 = vbcast.lane.b32.xlu0 %v584, %s641
    %v643 = vpop.permute.xlu0 %642
    %s645 = sor.u32 256, 120
    %646 = vbcast.lane.b32.xlu0 %v584, %s645
    %v647 = vpop.permute.xlu0 %646
    %v648 = vlaneseq
    %v649 = vshrl.u32 %v648, 7
    %v650 = vsub.s32 6, %v649
    %v651 = vrot.slane %v244, %v650
    %653 = vbcast.lane.b32.xlu0 %v651, 256
    %v654 = vpop.permute.xlu0 %653
    %s656 = sor.u32 256, 8
    %657 = vbcast.lane.b32.xlu0 %v651, %s656
    %v658 = vpop.permute.xlu0 %657
    %s660 = sor.u32 256, 16
    %661 = vbcast.lane.b32.xlu0 %v651, %s660
    %v662 = vpop.permute.xlu0 %661
    %s664 = sor.u32 256, 24
    %665 = vbcast.lane.b32.xlu0 %v651, %s664
    %v666 = vpop.permute.xlu0 %665
    %s668 = sor.u32 256, 32
    %669 = vbcast.lane.b32.xlu0 %v651, %s668
    %v670 = vpop.permute.xlu0 %669
    %s672 = sor.u32 256, 40
    %673 = vbcast.lane.b32.xlu0 %v651, %s672
    %v674 = vpop.permute.xlu0 %673
    %s676 = sor.u32 256, 48
    %677 = vbcast.lane.b32.xlu0 %v651, %s676
    %v678 = vpop.permute.xlu0 %677
    %s680 = sor.u32 256, 56
    %681 = vbcast.lane.b32.xlu0 %v651, %s680
    %v682 = vpop.permute.xlu0 %681
    %s684 = sor.u32 256, 64
    %685 = vbcast.lane.b32.xlu0 %v651, %s684
    %v686 = vpop.permute.xlu0 %685
    %s688 = sor.u32 256, 72
    %689 = vbcast.lane.b32.xlu0 %v651, %s688
    %v690 = vpop.permute.xlu0 %689
    %s692 = sor.u32 256, 80
    %693 = vbcast.lane.b32.xlu0 %v651, %s692
    %v694 = vpop.permute.xlu0 %693
    %s696 = sor.u32 256, 88
    %697 = vbcast.lane.b32.xlu0 %v651, %s696
    %v698 = vpop.permute.xlu0 %697
    %s700 = sor.u32 256, 96
    %701 = vbcast.lane.b32.xlu0 %v651, %s700
    %v702 = vpop.permute.xlu0 %701
    %s704 = sor.u32 256, 104
    %705 = vbcast.lane.b32.xlu0 %v651, %s704
    %v706 = vpop.permute.xlu0 %705
    %s708 = sor.u32 256, 112
    %709 = vbcast.lane.b32.xlu0 %v651, %s708
    %v710 = vpop.permute.xlu0 %709
    %s712 = sor.u32 256, 120
    %713 = vbcast.lane.b32.xlu0 %v651, %s712
    %v714 = vpop.permute.xlu0 %713
    %v715 = vlaneseq
    %v716 = vshrl.u32 %v715, 7
    %v717 = vsub.s32 7, %v716
    %v718 = vrot.slane %v244, %v717
    %720 = vbcast.lane.b32.xlu0 %v718, 256
    %v721 = vpop.permute.xlu0 %720
    %s723 = sor.u32 256, 8
    %724 = vbcast.lane.b32.xlu0 %v718, %s723
    %v725 = vpop.permute.xlu0 %724
    %s727 = sor.u32 256, 16
    %728 = vbcast.lane.b32.xlu0 %v718, %s727
    %v729 = vpop.permute.xlu0 %728
    %s731 = sor.u32 256, 24
    %732 = vbcast.lane.b32.xlu0 %v718, %s731
    %v733 = vpop.permute.xlu0 %732
    %s735 = sor.u32 256, 32
    %736 = vbcast.lane.b32.xlu0 %v718, %s735
    %v737 = vpop.permute.xlu0 %736
    %s739 = sor.u32 256, 40
    %740 = vbcast.lane.b32.xlu0 %v718, %s739
    %v741 = vpop.permute.xlu0 %740
    %s743 = sor.u32 256, 48
    %744 = vbcast.lane.b32.xlu0 %v718, %s743
    %v745 = vpop.permute.xlu0 %744
    %s747 = sor.u32 256, 56
    %748 = vbcast.lane.b32.xlu0 %v718, %s747
    %v749 = vpop.permute.xlu0 %748
    %s751 = sor.u32 256, 64
    %752 = vbcast.lane.b32.xlu0 %v718, %s751
    %v753 = vpop.permute.xlu0 %752
    %s755 = sor.u32 256, 72
    %756 = vbcast.lane.b32.xlu0 %v718, %s755
    %v757 = vpop.permute.xlu0 %756
    %s759 = sor.u32 256, 80
    %760 = vbcast.lane.b32.xlu0 %v718, %s759
    %v761 = vpop.permute.xlu0 %760
    %s763 = sor.u32 256, 88
    %764 = vbcast.lane.b32.xlu0 %v718, %s763
    %v765 = vpop.permute.xlu0 %764
    %s767 = sor.u32 256, 96
    %768 = vbcast.lane.b32.xlu0 %v718, %s767
    %v769 = vpop.permute.xlu0 %768
    %s771 = sor.u32 256, 104
    %772 = vbcast.lane.b32.xlu0 %v718, %s771
    %v773 = vpop.permute.xlu0 %772
    %s775 = sor.u32 256, 112
    %776 = vbcast.lane.b32.xlu0 %v718, %s775
    %v777 = vpop.permute.xlu0 %776
    %s779 = sor.u32 256, 120
    %780 = vbcast.lane.b32.xlu0 %v718, %s779
    %v781 = vpop.permute.xlu0 %780
    %v910 = vmul.f32 %v212, %v252
    %v911 = vmul.f32 %v213, %v256
    %v912 = vmul.f32 %v214, %v260
    %v913 = vmul.f32 %v215, %v264
    %v914 = vmul.f32 %v216, %v268
    %v915 = vmul.f32 %v217, %v272
    %v916 = vmul.f32 %v218, %v276
    %v917 = vmul.f32 %v219, %v280
    %v918 = vmul.f32 %v220, %v284
    %v919 = vmul.f32 %v221, %v288
    %v920 = vmul.f32 %v222, %v292
    %v921 = vmul.f32 %v223, %v296
    %v922 = vmul.f32 %v224, %v300
    %v923 = vmul.f32 %v225, %v304
    %v924 = vmul.f32 %v226, %v308
    %v925 = vmul.f32 %v227, %v312
    %v926 = vmul.f32 %v212, %v319
    %v927 = vmul.f32 %v213, %v323
    %v928 = vmul.f32 %v214, %v327
    %v929 = vmul.f32 %v215, %v331
    %v930 = vmul.f32 %v216, %v335
    %v931 = vmul.f32 %v217, %v339
    %v932 = vmul.f32 %v218, %v343
    %v933 = vmul.f32 %v219, %v347
    %v934 = vmul.f32 %v220, %v351
    %v935 = vmul.f32 %v221, %v355
    %v936 = vmul.f32 %v222, %v359
    %v937 = vmul.f32 %v223, %v363
    %v938 = vmul.f32 %v224, %v367
    %v939 = vmul.f32 %v225, %v371
    %v940 = vmul.f32 %v226, %v375
    %v941 = vmul.f32 %v227, %v379
    %v942 = vmul.f32 %v212, %v386
    %v943 = vmul.f32 %v213, %v390
    %v944 = vmul.f32 %v214, %v394
    %v945 = vmul.f32 %v215, %v398
    %v946 = vmul.f32 %v216, %v402
    %v947 = vmul.f32 %v217, %v406
    %v948 = vmul.f32 %v218, %v410
    %v949 = vmul.f32 %v219, %v414
    %v950 = vmul.f32 %v220, %v418
    %v951 = vmul.f32 %v221, %v422
    %v952 = vmul.f32 %v222, %v426
    %v953 = vmul.f32 %v223, %v430
    %v954 = vmul.f32 %v224, %v434
    %v955 = vmul.f32 %v225, %v438
    %v956 = vmul.f32 %v226, %v442
    %v957 = vmul.f32 %v227, %v446
    %v958 = vmul.f32 %v212, %v453
    %v959 = vmul.f32 %v213, %v457
    %v960 = vmul.f32 %v214, %v461
    %v961 = vmul.f32 %v215, %v465
    %v962 = vmul.f32 %v216, %v469
    %v963 = vmul.f32 %v217, %v473
    %v964 = vmul.f32 %v218, %v477
    %v965 = vmul.f32 %v219, %v481
    %v966 = vmul.f32 %v220, %v485
    %v967 = vmul.f32 %v221, %v489
    %v968 = vmul.f32 %v222, %v493
    %v969 = vmul.f32 %v223, %v497
    %v970 = vmul.f32 %v224, %v501
    %v971 = vmul.f32 %v225, %v505
    %v972 = vmul.f32 %v226, %v509
    %v973 = vmul.f32 %v227, %v513
    %v974 = vmul.f32 %v212, %v520
    %v975 = vmul.f32 %v213, %v524
    %v976 = vmul.f32 %v214, %v528
    %v977 = vmul.f32 %v215, %v532
    %v978 = vmul.f32 %v216, %v536
    %v979 = vmul.f32 %v217, %v540
    %v980 = vmul.f32 %v218, %v544
    %v981 = vmul.f32 %v219, %v548
    %v982 = vmul.f32 %v220, %v552
    %v983 = vmul.f32 %v221, %v556
    %v984 = vmul.f32 %v222, %v560
    %v985 = vmul.f32 %v223, %v564
    %v986 = vmul.f32 %v224, %v568
    %v987 = vmul.f32 %v225, %v572
    %v988 = vmul.f32 %v226, %v576
    %v989 = vmul.f32 %v227, %v580
    %v990 = vmul.f32 %v212, %v587
    %v991 = vmul.f32 %v213, %v591
    %v992 = vmul.f32 %v214, %v595
    %v993 = vmul.f32 %v215, %v599
    %v994 = vmul.f32 %v216, %v603
    %v995 = vmul.f32 %v217, %v607
    %v996 = vmul.f32 %v218, %v611
    %v997 = vmul.f32 %v219, %v615
    %v998 = vmul.f32 %v220, %v619
    %v999 = vmul.f32 %v221, %v623
    %v1000 = vmul.f32 %v222, %v627
    %v1001 = vmul.f32 %v223, %v631
    %v1002 = vmul.f32 %v224, %v635
    %v1003 = vmul.f32 %v225, %v639
    %v1004 = vmul.f32 %v226, %v643
    %v1005 = vmul.f32 %v227, %v647
    %v1006 = vmul.f32 %v212, %v654
    %v1007 = vmul.f32 %v213, %v658
    %v1008 = vmul.f32 %v214, %v662
    %v1009 = vmul.f32 %v215, %v666
    %v1010 = vmul.f32 %v216, %v670
    %v1011 = vmul.f32 %v217, %v674
    %v1012 = vmul.f32 %v218, %v678
    %v1013 = vmul.f32 %v219, %v682
    %v1014 = vmul.f32 %v220, %v686
    %v1015 = vmul.f32 %v221, %v690
    %v1016 = vmul.f32 %v222, %v694
    %v1017 = vmul.f32 %v223, %v698
    %v1018 = vmul.f32 %v224, %v702
    %v1019 = vmul.f32 %v225, %v706
    %v1020 = vmul.f32 %v226, %v710
    %v1021 = vmul.f32 %v227, %v714
    %v1022 = vmul.f32 %v212, %v721
    %v1023 = vmul.f32 %v213, %v725
    %v1024 = vmul.f32 %v214, %v729
    %v1025 = vmul.f32 %v215, %v733
    %v1026 = vmul.f32 %v216, %v737
    %v1027 = vmul.f32 %v217, %v741
    %v1028 = vmul.f32 %v218, %v745
    %v1029 = vmul.f32 %v219, %v749
    %v1030 = vmul.f32 %v220, %v753
    %v1031 = vmul.f32 %v221, %v757
    %v1032 = vmul.f32 %v222, %v761
    %v1033 = vmul.f32 %v223, %v765
    %v1034 = vmul.f32 %v224, %v769
    %v1035 = vmul.f32 %v225, %v773
    %v1036 = vmul.f32 %v226, %v777
    %v1037 = vmul.f32 %v227, %v781
    %v1038 = vmul.f32 %v228, %v252
    %v1039 = vmul.f32 %v229, %v256
    %v1040 = vmul.f32 %v230, %v260
    %v1041 = vmul.f32 %v231, %v264
    %v1042 = vmul.f32 %v232, %v268
    %v1043 = vmul.f32 %v233, %v272
    %v1044 = vmul.f32 %v234, %v276
    %v1045 = vmul.f32 %v235, %v280
    %v1046 = vmul.f32 %v236, %v284
    %v1047 = vmul.f32 %v237, %v288
    %v1048 = vmul.f32 %v238, %v292
    %v1049 = vmul.f32 %v239, %v296
    %v1050 = vmul.f32 %v240, %v300
    %v1051 = vmul.f32 %v241, %v304
    %v1052 = vmul.f32 %v242, %v308
    %v1053 = vmul.f32 %v243, %v312
    %v1054 = vmul.f32 %v228, %v319
    %v1055 = vmul.f32 %v229, %v323
    %v1056 = vmul.f32 %v230, %v327
    %v1057 = vmul.f32 %v231, %v331
    %v1058 = vmul.f32 %v232, %v335
    %v1059 = vmul.f32 %v233, %v339
    %v1060 = vmul.f32 %v234, %v343
    %v1061 = vmul.f32 %v235, %v347
    %v1062 = vmul.f32 %v236, %v351
    %v1063 = vmul.f32 %v237, %v355
    %v1064 = vmul.f32 %v238, %v359
    %v1065 = vmul.f32 %v239, %v363
    %v1066 = vmul.f32 %v240, %v367
    %v1067 = vmul.f32 %v241, %v371
    %v1068 = vmul.f32 %v242, %v375
    %v1069 = vmul.f32 %v243, %v379
    %v1070 = vmul.f32 %v228, %v386
    %v1071 = vmul.f32 %v229, %v390
    %v1072 = vmul.f32 %v230, %v394
    %v1073 = vmul.f32 %v231, %v398
    %v1074 = vmul.f32 %v232, %v402
    %v1075 = vmul.f32 %v233, %v406
    %v1076 = vmul.f32 %v234, %v410
    %v1077 = vmul.f32 %v235, %v414
    %v1078 = vmul.f32 %v236, %v418
    %v1079 = vmul.f32 %v237, %v422
    %v1080 = vmul.f32 %v238, %v426
    %v1081 = vmul.f32 %v239, %v430
    %v1082 = vmul.f32 %v240, %v434
    %v1083 = vmul.f32 %v241, %v438
    %v1084 = vmul.f32 %v242, %v442
    %v1085 = vmul.f32 %v243, %v446
    %v1086 = vmul.f32 %v228, %v453
    %v1087 = vmul.f32 %v229, %v457
    %v1088 = vmul.f32 %v230, %v461
    %v1089 = vmul.f32 %v231, %v465
    %v1090 = vmul.f32 %v232, %v469
    %v1091 = vmul.f32 %v233, %v473
    %v1092 = vmul.f32 %v234, %v477
    %v1093 = vmul.f32 %v235, %v481
    %v1094 = vmul.f32 %v236, %v485
    %v1095 = vmul.f32 %v237, %v489
    %v1096 = vmul.f32 %v238, %v493
    %v1097 = vmul.f32 %v239, %v497
    %v1098 = vmul.f32 %v240, %v501
    %v1099 = vmul.f32 %v241, %v505
    %v1100 = vmul.f32 %v242, %v509
    %v1101 = vmul.f32 %v243, %v513
    %v1102 = vmul.f32 %v228, %v520
    %v1103 = vmul.f32 %v229, %v524
    %v1104 = vmul.f32 %v230, %v528
    %v1105 = vmul.f32 %v231, %v532
    %v1106 = vmul.f32 %v232, %v536
    %v1107 = vmul.f32 %v233, %v540
    %v1108 = vmul.f32 %v234, %v544
    %v1109 = vmul.f32 %v235, %v548
    %v1110 = vmul.f32 %v236, %v552
    %v1111 = vmul.f32 %v237, %v556
    %v1112 = vmul.f32 %v238, %v560
    %v1113 = vmul.f32 %v239, %v564
    %v1114 = vmul.f32 %v240, %v568
    %v1115 = vmul.f32 %v241, %v572
    %v1116 = vmul.f32 %v242, %v576
    %v1117 = vmul.f32 %v243, %v580
    %v1118 = vmul.f32 %v228, %v587
    %v1119 = vmul.f32 %v229, %v591
    %v1120 = vmul.f32 %v230, %v595
    %v1121 = vmul.f32 %v231, %v599
    %v1122 = vmul.f32 %v232, %v603
    %v1123 = vmul.f32 %v233, %v607
    %v1124 = vmul.f32 %v234, %v611
    %v1125 = vmul.f32 %v235, %v615
    %v1126 = vmul.f32 %v236, %v619
    %v1127 = vmul.f32 %v237, %v623
    %v1128 = vmul.f32 %v238, %v627
    %v1129 = vmul.f32 %v239, %v631
    %v1130 = vmul.f32 %v240, %v635
    %v1131 = vmul.f32 %v241, %v639
    %v1132 = vmul.f32 %v242, %v643
    %v1133 = vmul.f32 %v243, %v647
    %v1134 = vmul.f32 %v228, %v654
    %v1135 = vmul.f32 %v229, %v658
    %v1136 = vmul.f32 %v230, %v662
    %v1137 = vmul.f32 %v231, %v666
    %v1138 = vmul.f32 %v232, %v670
    %v1139 = vmul.f32 %v233, %v674
    %v1140 = vmul.f32 %v234, %v678
    %v1141 = vmul.f32 %v235, %v682
    %v1142 = vmul.f32 %v236, %v686
    %v1143 = vmul.f32 %v237, %v690
    %v1144 = vmul.f32 %v238, %v694
    %v1145 = vmul.f32 %v239, %v698
    %v1146 = vmul.f32 %v240, %v702
    %v1147 = vmul.f32 %v241, %v706
    %v1148 = vmul.f32 %v242, %v710
    %v1149 = vmul.f32 %v243, %v714
    %v1150 = vmul.f32 %v228, %v721
    %v1151 = vmul.f32 %v229, %v725
    %v1152 = vmul.f32 %v230, %v729
    %v1153 = vmul.f32 %v231, %v733
    %v1154 = vmul.f32 %v232, %v737
    %v1155 = vmul.f32 %v233, %v741
    %v1156 = vmul.f32 %v234, %v745
    %v1157 = vmul.f32 %v235, %v749
    %v1158 = vmul.f32 %v236, %v753
    %v1159 = vmul.f32 %v237, %v757
    %v1160 = vmul.f32 %v238, %v761
    %v1161 = vmul.f32 %v239, %v765
    %v1162 = vmul.f32 %v240, %v769
    %v1163 = vmul.f32 %v241, %v773
    %v1164 = vmul.f32 %v242, %v777
    %v1165 = vmul.f32 %v243, %v781
    %1422 = vset.pattern.permute.xlu0 0
    %1423 = vperm.xlu0 %1422, %v910
    %v1424 = vpop.permute.xlu0 %1423
    %1425 = vset.pattern.permute.xlu0 0
    %1426 = vperm.xlu0 %1425, %v911
    %v1427 = vpop.permute.xlu0 %1426
    %1428 = vset.pattern.permute.xlu0 0
    %1429 = vperm.xlu0 %1428, %v912
    %v1430 = vpop.permute.xlu0 %1429
    %1431 = vset.pattern.permute.xlu0 0
    %1432 = vperm.xlu0 %1431, %v913
    %v1433 = vpop.permute.xlu0 %1432
    %1434 = vset.pattern.permute.xlu0 0
    %1435 = vperm.xlu0 %1434, %v914
    %v1436 = vpop.permute.xlu0 %1435
    %1437 = vset.pattern.permute.xlu0 0
    %1438 = vperm.xlu0 %1437, %v915
    %v1439 = vpop.permute.xlu0 %1438
    %1440 = vset.pattern.permute.xlu0 0
    %1441 = vperm.xlu0 %1440, %v916
    %v1442 = vpop.permute.xlu0 %1441
    %1443 = vset.pattern.permute.xlu0 0
    %1444 = vperm.xlu0 %1443, %v917
    %v1445 = vpop.permute.xlu0 %1444
    %1446 = vset.pattern.permute.xlu0 0
    %1447 = vperm.xlu0 %1446, %v918
    %v1448 = vpop.permute.xlu0 %1447
    %1449 = vset.pattern.permute.xlu0 0
    %1450 = vperm.xlu0 %1449, %v919
    %v1451 = vpop.permute.xlu0 %1450
    %1452 = vset.pattern.permute.xlu0 0
    %1453 = vperm.xlu0 %1452, %v920
    %v1454 = vpop.permute.xlu0 %1453
    %1455 = vset.pattern.permute.xlu0 0
    %1456 = vperm.xlu0 %1455, %v921
    %v1457 = vpop.permute.xlu0 %1456
    %1458 = vset.pattern.permute.xlu0 0
    %1459 = vperm.xlu0 %1458, %v922
    %v1460 = vpop.permute.xlu0 %1459
    %1461 = vset.pattern.permute.xlu0 0
    %1462 = vperm.xlu0 %1461, %v923
    %v1463 = vpop.permute.xlu0 %1462
    %1464 = vset.pattern.permute.xlu0 0
    %1465 = vperm.xlu0 %1464, %v924
    %v1466 = vpop.permute.xlu0 %1465
    %1467 = vset.pattern.permute.xlu0 0
    %1468 = vperm.xlu0 %1467, %v925
    %v1469 = vpop.permute.xlu0 %1468
    %1470 = vset.pattern.permute.xlu0 0
    %1471 = vperm.xlu0 %1470, %v926
    %v1472 = vpop.permute.xlu0 %1471
    %1473 = vset.pattern.permute.xlu0 0
    %1474 = vperm.xlu0 %1473, %v927
    %v1475 = vpop.permute.xlu0 %1474
    %1476 = vset.pattern.permute.xlu0 0
    %1477 = vperm.xlu0 %1476, %v928
    %v1478 = vpop.permute.xlu0 %1477
    %1479 = vset.pattern.permute.xlu0 0
    %1480 = vperm.xlu0 %1479, %v929
    %v1481 = vpop.permute.xlu0 %1480
    %1482 = vset.pattern.permute.xlu0 0
    %1483 = vperm.xlu0 %1482, %v930
    %v1484 = vpop.permute.xlu0 %1483
    %1485 = vset.pattern.permute.xlu0 0
    %1486 = vperm.xlu0 %1485, %v931
    %v1487 = vpop.permute.xlu0 %1486
    %1488 = vset.pattern.permute.xlu0 0
    %1489 = vperm.xlu0 %1488, %v932
    %v1490 = vpop.permute.xlu0 %1489
    %1491 = vset.pattern.permute.xlu0 0
    %1492 = vperm.xlu0 %1491, %v933
    %v1493 = vpop.permute.xlu0 %1492
    %1494 = vset.pattern.permute.xlu0 0
    %1495 = vperm.xlu0 %1494, %v934
    %v1496 = vpop.permute.xlu0 %1495
    %1497 = vset.pattern.permute.xlu0 0
    %1498 = vperm.xlu0 %1497, %v935
    %v1499 = vpop.permute.xlu0 %1498
    %1500 = vset.pattern.permute.xlu0 0
    %1501 = vperm.xlu0 %1500, %v936
    %v1502 = vpop.permute.xlu0 %1501
    %1503 = vset.pattern.permute.xlu0 0
    %1504 = vperm.xlu0 %1503, %v937
    %v1505 = vpop.permute.xlu0 %1504
    %1506 = vset.pattern.permute.xlu0 0
    %1507 = vperm.xlu0 %1506, %v938
    %v1508 = vpop.permute.xlu0 %1507
    %1509 = vset.pattern.permute.xlu0 0
    %1510 = vperm.xlu0 %1509, %v939
    %v1511 = vpop.permute.xlu0 %1510
    %1512 = vset.pattern.permute.xlu0 0
    %1513 = vperm.xlu0 %1512, %v940
    %v1514 = vpop.permute.xlu0 %1513
    %1515 = vset.pattern.permute.xlu0 0
    %1516 = vperm.xlu0 %1515, %v941
    %v1517 = vpop.permute.xlu0 %1516
    %1518 = vset.pattern.permute.xlu0 0
    %1519 = vperm.xlu0 %1518, %v942
    %v1520 = vpop.permute.xlu0 %1519
    %1521 = vset.pattern.permute.xlu0 0
    %1522 = vperm.xlu0 %1521, %v943
    %v1523 = vpop.permute.xlu0 %1522
    %1524 = vset.pattern.permute.xlu0 0
    %1525 = vperm.xlu0 %1524, %v944
    %v1526 = vpop.permute.xlu0 %1525
    %1527 = vset.pattern.permute.xlu0 0
    %1528 = vperm.xlu0 %1527, %v945
    %v1529 = vpop.permute.xlu0 %1528
    %1530 = vset.pattern.permute.xlu0 0
    %1531 = vperm.xlu0 %1530, %v946
    %v1532 = vpop.permute.xlu0 %1531
    %1533 = vset.pattern.permute.xlu0 0
    %1534 = vperm.xlu0 %1533, %v947
    %v1535 = vpop.permute.xlu0 %1534
    %1536 = vset.pattern.permute.xlu0 0
    %1537 = vperm.xlu0 %1536, %v948
    %v1538 = vpop.permute.xlu0 %1537
    %1539 = vset.pattern.permute.xlu0 0
    %1540 = vperm.xlu0 %1539, %v949
    %v1541 = vpop.permute.xlu0 %1540
    %1542 = vset.pattern.permute.xlu0 0
    %1543 = vperm.xlu0 %1542, %v950
    %v1544 = vpop.permute.xlu0 %1543
    %1545 = vset.pattern.permute.xlu0 0
    %1546 = vperm.xlu0 %1545, %v951
    %v1547 = vpop.permute.xlu0 %1546
    %1548 = vset.pattern.permute.xlu0 0
    %1549 = vperm.xlu0 %1548, %v952
    %v1550 = vpop.permute.xlu0 %1549
    %1551 = vset.pattern.permute.xlu0 0
    %1552 = vperm.xlu0 %1551, %v953
    %v1553 = vpop.permute.xlu0 %1552
    %1554 = vset.pattern.permute.xlu0 0
    %1555 = vperm.xlu0 %1554, %v954
    %v1556 = vpop.permute.xlu0 %1555
    %1557 = vset.pattern.permute.xlu0 0
    %1558 = vperm.xlu0 %1557, %v955
    %v1559 = vpop.permute.xlu0 %1558
    %1560 = vset.pattern.permute.xlu0 0
    %1561 = vperm.xlu0 %1560, %v956
    %v1562 = vpop.permute.xlu0 %1561
    %1563 = vset.pattern.permute.xlu0 0
    %1564 = vperm.xlu0 %1563, %v957
    %v1565 = vpop.permute.xlu0 %1564
    %1566 = vset.pattern.permute.xlu0 0
    %1567 = vperm.xlu0 %1566, %v958
    %v1568 = vpop.permute.xlu0 %1567
    %1569 = vset.pattern.permute.xlu0 0
    %1570 = vperm.xlu0 %1569, %v959
    %v1571 = vpop.permute.xlu0 %1570
    %1572 = vset.pattern.permute.xlu0 0
    %1573 = vperm.xlu0 %1572, %v960
    %v1574 = vpop.permute.xlu0 %1573
    %1575 = vset.pattern.permute.xlu0 0
    %1576 = vperm.xlu0 %1575, %v961
    %v1577 = vpop.permute.xlu0 %1576
    %1578 = vset.pattern.permute.xlu0 0
    %1579 = vperm.xlu0 %1578, %v962
    %v1580 = vpop.permute.xlu0 %1579
    %1581 = vset.pattern.permute.xlu0 0
    %1582 = vperm.xlu0 %1581, %v963
    %v1583 = vpop.permute.xlu0 %1582
    %1584 = vset.pattern.permute.xlu0 0
    %1585 = vperm.xlu0 %1584, %v964
    %v1586 = vpop.permute.xlu0 %1585
    %1587 = vset.pattern.permute.xlu0 0
    %1588 = vperm.xlu0 %1587, %v965
    %v1589 = vpop.permute.xlu0 %1588
    %1590 = vset.pattern.permute.xlu0 0
    %1591 = vperm.xlu0 %1590, %v966
    %v1592 = vpop.permute.xlu0 %1591
    %1593 = vset.pattern.permute.xlu0 0
    %1594 = vperm.xlu0 %1593, %v967
    %v1595 = vpop.permute.xlu0 %1594
    %1596 = vset.pattern.permute.xlu0 0
    %1597 = vperm.xlu0 %1596, %v968
    %v1598 = vpop.permute.xlu0 %1597
    %1599 = vset.pattern.permute.xlu0 0
    %1600 = vperm.xlu0 %1599, %v969
    %v1601 = vpop.permute.xlu0 %1600
    %1602 = vset.pattern.permute.xlu0 0
    %1603 = vperm.xlu0 %1602, %v970
    %v1604 = vpop.permute.xlu0 %1603
    %1605 = vset.pattern.permute.xlu0 0
    %1606 = vperm.xlu0 %1605, %v971
    %v1607 = vpop.permute.xlu0 %1606
    %1608 = vset.pattern.permute.xlu0 0
    %1609 = vperm.xlu0 %1608, %v972
    %v1610 = vpop.permute.xlu0 %1609
    %1611 = vset.pattern.permute.xlu0 0
    %1612 = vperm.xlu0 %1611, %v973
    %v1613 = vpop.permute.xlu0 %1612
    %1614 = vset.pattern.permute.xlu0 0
    %1615 = vperm.xlu0 %1614, %v974
    %v1616 = vpop.permute.xlu0 %1615
    %1617 = vset.pattern.permute.xlu0 0
    %1618 = vperm.xlu0 %1617, %v975
    %v1619 = vpop.permute.xlu0 %1618
    %1620 = vset.pattern.permute.xlu0 0
    %1621 = vperm.xlu0 %1620, %v976
    %v1622 = vpop.permute.xlu0 %1621
    %1623 = vset.pattern.permute.xlu0 0
    %1624 = vperm.xlu0 %1623, %v977
    %v1625 = vpop.permute.xlu0 %1624
    %1626 = vset.pattern.permute.xlu0 0
    %1627 = vperm.xlu0 %1626, %v978
    %v1628 = vpop.permute.xlu0 %1627
    %1629 = vset.pattern.permute.xlu0 0
    %1630 = vperm.xlu0 %1629, %v979
    %v1631 = vpop.permute.xlu0 %1630
    %1632 = vset.pattern.permute.xlu0 0
    %1633 = vperm.xlu0 %1632, %v980
    %v1634 = vpop.permute.xlu0 %1633
    %1635 = vset.pattern.permute.xlu0 0
    %1636 = vperm.xlu0 %1635, %v981
    %v1637 = vpop.permute.xlu0 %1636
    %1638 = vset.pattern.permute.xlu0 0
    %1639 = vperm.xlu0 %1638, %v982
    %v1640 = vpop.permute.xlu0 %1639
    %1641 = vset.pattern.permute.xlu0 0
    %1642 = vperm.xlu0 %1641, %v983
    %v1643 = vpop.permute.xlu0 %1642
    %1644 = vset.pattern.permute.xlu0 0
    %1645 = vperm.xlu0 %1644, %v984
    %v1646 = vpop.permute.xlu0 %1645
    %1647 = vset.pattern.permute.xlu0 0
    %1648 = vperm.xlu0 %1647, %v985
    %v1649 = vpop.permute.xlu0 %1648
    %1650 = vset.pattern.permute.xlu0 0
    %1651 = vperm.xlu0 %1650, %v986
    %v1652 = vpop.permute.xlu0 %1651
    %1653 = vset.pattern.permute.xlu0 0
    %1654 = vperm.xlu0 %1653, %v987
    %v1655 = vpop.permute.xlu0 %1654
    %1656 = vset.pattern.permute.xlu0 0
    %1657 = vperm.xlu0 %1656, %v988
    %v1658 = vpop.permute.xlu0 %1657
    %1659 = vset.pattern.permute.xlu0 0
    %1660 = vperm.xlu0 %1659, %v989
    %v1661 = vpop.permute.xlu0 %1660
    %1662 = vset.pattern.permute.xlu0 0
    %1663 = vperm.xlu0 %1662, %v990
    %v1664 = vpop.permute.xlu0 %1663
    %1665 = vset.pattern.permute.xlu0 0
    %1666 = vperm.xlu0 %1665, %v991
    %v1667 = vpop.permute.xlu0 %1666
    %1668 = vset.pattern.permute.xlu0 0
    %1669 = vperm.xlu0 %1668, %v992
    %v1670 = vpop.permute.xlu0 %1669
    %1671 = vset.pattern.permute.xlu0 0
    %1672 = vperm.xlu0 %1671, %v993
    %v1673 = vpop.permute.xlu0 %1672
    %1674 = vset.pattern.permute.xlu0 0
    %1675 = vperm.xlu0 %1674, %v994
    %v1676 = vpop.permute.xlu0 %1675
    %1677 = vset.pattern.permute.xlu0 0
    %1678 = vperm.xlu0 %1677, %v995
    %v1679 = vpop.permute.xlu0 %1678
    %1680 = vset.pattern.permute.xlu0 0
    %1681 = vperm.xlu0 %1680, %v996
    %v1682 = vpop.permute.xlu0 %1681
    %1683 = vset.pattern.permute.xlu0 0
    %1684 = vperm.xlu0 %1683, %v997
    %v1685 = vpop.permute.xlu0 %1684
    %1686 = vset.pattern.permute.xlu0 0
    %1687 = vperm.xlu0 %1686, %v998
    %v1688 = vpop.permute.xlu0 %1687
    %1689 = vset.pattern.permute.xlu0 0
    %1690 = vperm.xlu0 %1689, %v999
    %v1691 = vpop.permute.xlu0 %1690
    %1692 = vset.pattern.permute.xlu0 0
    %1693 = vperm.xlu0 %1692, %v1000
    %v1694 = vpop.permute.xlu0 %1693
    %1695 = vset.pattern.permute.xlu0 0
    %1696 = vperm.xlu0 %1695, %v1001
    %v1697 = vpop.permute.xlu0 %1696
    %1698 = vset.pattern.permute.xlu0 0
    %1699 = vperm.xlu0 %1698, %v1002
    %v1700 = vpop.permute.xlu0 %1699
    %1701 = vset.pattern.permute.xlu0 0
    %1702 = vperm.xlu0 %1701, %v1003
    %v1703 = vpop.permute.xlu0 %1702
    %1704 = vset.pattern.permute.xlu0 0
    %1705 = vperm.xlu0 %1704, %v1004
    %v1706 = vpop.permute.xlu0 %1705
    %1707 = vset.pattern.permute.xlu0 0
    %1708 = vperm.xlu0 %1707, %v1005
    %v1709 = vpop.permute.xlu0 %1708
    %1710 = vset.pattern.permute.xlu0 0
    %1711 = vperm.xlu0 %1710, %v1006
    %v1712 = vpop.permute.xlu0 %1711
    %1713 = vset.pattern.permute.xlu0 0
    %1714 = vperm.xlu0 %1713, %v1007
    %v1715 = vpop.permute.xlu0 %1714
    %1716 = vset.pattern.permute.xlu0 0
    %1717 = vperm.xlu0 %1716, %v1008
    %v1718 = vpop.permute.xlu0 %1717
    %1719 = vset.pattern.permute.xlu0 0
    %1720 = vperm.xlu0 %1719, %v1009
    %v1721 = vpop.permute.xlu0 %1720
    %1722 = vset.pattern.permute.xlu0 0
    %1723 = vperm.xlu0 %1722, %v1010
    %v1724 = vpop.permute.xlu0 %1723
    %1725 = vset.pattern.permute.xlu0 0
    %1726 = vperm.xlu0 %1725, %v1011
    %v1727 = vpop.permute.xlu0 %1726
    %1728 = vset.pattern.permute.xlu0 0
    %1729 = vperm.xlu0 %1728, %v1012
    %v1730 = vpop.permute.xlu0 %1729
    %1731 = vset.pattern.permute.xlu0 0
    %1732 = vperm.xlu0 %1731, %v1013
    %v1733 = vpop.permute.xlu0 %1732
    %1734 = vset.pattern.permute.xlu0 0
    %1735 = vperm.xlu0 %1734, %v1014
    %v1736 = vpop.permute.xlu0 %1735
    %1737 = vset.pattern.permute.xlu0 0
    %1738 = vperm.xlu0 %1737, %v1015
    %v1739 = vpop.permute.xlu0 %1738
    %1740 = vset.pattern.permute.xlu0 0
    %1741 = vperm.xlu0 %1740, %v1016
    %v1742 = vpop.permute.xlu0 %1741
    %1743 = vset.pattern.permute.xlu0 0
    %1744 = vperm.xlu0 %1743, %v1017
    %v1745 = vpop.permute.xlu0 %1744
    %1746 = vset.pattern.permute.xlu0 0
    %1747 = vperm.xlu0 %1746, %v1018
    %v1748 = vpop.permute.xlu0 %1747
    %1749 = vset.pattern.permute.xlu0 0
    %1750 = vperm.xlu0 %1749, %v1019
    %v1751 = vpop.permute.xlu0 %1750
    %1752 = vset.pattern.permute.xlu0 0
    %1753 = vperm.xlu0 %1752, %v1020
    %v1754 = vpop.permute.xlu0 %1753
    %1755 = vset.pattern.permute.xlu0 0
    %1756 = vperm.xlu0 %1755, %v1021
    %v1757 = vpop.permute.xlu0 %1756
    %1758 = vset.pattern.permute.xlu0 0
    %1759 = vperm.xlu0 %1758, %v1022
    %v1760 = vpop.permute.xlu0 %1759
    %1761 = vset.pattern.permute.xlu0 0
    %1762 = vperm.xlu0 %1761, %v1023
    %v1763 = vpop.permute.xlu0 %1762
    %1764 = vset.pattern.permute.xlu0 0
    %1765 = vperm.xlu0 %1764, %v1024
    %v1766 = vpop.permute.xlu0 %1765
    %1767 = vset.pattern.permute.xlu0 0
    %1768 = vperm.xlu0 %1767, %v1025
    %v1769 = vpop.permute.xlu0 %1768
    %1770 = vset.pattern.permute.xlu0 0
    %1771 = vperm.xlu0 %1770, %v1026
    %v1772 = vpop.permute.xlu0 %1771
    %1773 = vset.pattern.permute.xlu0 0
    %1774 = vperm.xlu0 %1773, %v1027
    %v1775 = vpop.permute.xlu0 %1774
    %1776 = vset.pattern.permute.xlu0 0
    %1777 = vperm.xlu0 %1776, %v1028
    %v1778 = vpop.permute.xlu0 %1777
    %1779 = vset.pattern.permute.xlu0 0
    %1780 = vperm.xlu0 %1779, %v1029
    %v1781 = vpop.permute.xlu0 %1780
    %1782 = vset.pattern.permute.xlu0 0
    %1783 = vperm.xlu0 %1782, %v1030
    %v1784 = vpop.permute.xlu0 %1783
    %1785 = vset.pattern.permute.xlu0 0
    %1786 = vperm.xlu0 %1785, %v1031
    %v1787 = vpop.permute.xlu0 %1786
    %1788 = vset.pattern.permute.xlu0 0
    %1789 = vperm.xlu0 %1788, %v1032
    %v1790 = vpop.permute.xlu0 %1789
    %1791 = vset.pattern.permute.xlu0 0
    %1792 = vperm.xlu0 %1791, %v1033
    %v1793 = vpop.permute.xlu0 %1792
    %1794 = vset.pattern.permute.xlu0 0
    %1795 = vperm.xlu0 %1794, %v1034
    %v1796 = vpop.permute.xlu0 %1795
    %1797 = vset.pattern.permute.xlu0 0
    %1798 = vperm.xlu0 %1797, %v1035
    %v1799 = vpop.permute.xlu0 %1798
    %1800 = vset.pattern.permute.xlu0 0
    %1801 = vperm.xlu0 %1800, %v1036
    %v1802 = vpop.permute.xlu0 %1801
    %1803 = vset.pattern.permute.xlu0 0
    %1804 = vperm.xlu0 %1803, %v1037
    %v1805 = vpop.permute.xlu0 %1804
    %1806 = vset.pattern.permute.xlu0 0
    %1807 = vperm.xlu0 %1806, %v1038
    %v1808 = vpop.permute.xlu0 %1807
    %1809 = vset.pattern.permute.xlu0 0
    %1810 = vperm.xlu0 %1809, %v1039
    %v1811 = vpop.permute.xlu0 %1810
    %1812 = vset.pattern.permute.xlu0 0
    %1813 = vperm.xlu0 %1812, %v1040
    %v1814 = vpop.permute.xlu0 %1813
    %1815 = vset.pattern.permute.xlu0 0
    %1816 = vperm.xlu0 %1815, %v1041
    %v1817 = vpop.permute.xlu0 %1816
    %1818 = vset.pattern.permute.xlu0 0
    %1819 = vperm.xlu0 %1818, %v1042
    %v1820 = vpop.permute.xlu0 %1819
    %1821 = vset.pattern.permute.xlu0 0
    %1822 = vperm.xlu0 %1821, %v1043
    %v1823 = vpop.permute.xlu0 %1822
    %1824 = vset.pattern.permute.xlu0 0
    %1825 = vperm.xlu0 %1824, %v1044
    %v1826 = vpop.permute.xlu0 %1825
    %1827 = vset.pattern.permute.xlu0 0
    %1828 = vperm.xlu0 %1827, %v1045
    %v1829 = vpop.permute.xlu0 %1828
    %1830 = vset.pattern.permute.xlu0 0
    %1831 = vperm.xlu0 %1830, %v1046
    %v1832 = vpop.permute.xlu0 %1831
    %1833 = vset.pattern.permute.xlu0 0
    %1834 = vperm.xlu0 %1833, %v1047
    %v1835 = vpop.permute.xlu0 %1834
    %1836 = vset.pattern.permute.xlu0 0
    %1837 = vperm.xlu0 %1836, %v1048
    %v1838 = vpop.permute.xlu0 %1837
    %1839 = vset.pattern.permute.xlu0 0
    %1840 = vperm.xlu0 %1839, %v1049
    %v1841 = vpop.permute.xlu0 %1840
    %1842 = vset.pattern.permute.xlu0 0
    %1843 = vperm.xlu0 %1842, %v1050
    %v1844 = vpop.permute.xlu0 %1843
    %1845 = vset.pattern.permute.xlu0 0
    %1846 = vperm.xlu0 %1845, %v1051
    %v1847 = vpop.permute.xlu0 %1846
    %1848 = vset.pattern.permute.xlu0 0
    %1849 = vperm.xlu0 %1848, %v1052
    %v1850 = vpop.permute.xlu0 %1849
    %1851 = vset.pattern.permute.xlu0 0
    %1852 = vperm.xlu0 %1851, %v1053
    %v1853 = vpop.permute.xlu0 %1852
    %1854 = vset.pattern.permute.xlu0 0
    %1855 = vperm.xlu0 %1854, %v1054
    %v1856 = vpop.permute.xlu0 %1855
    %1857 = vset.pattern.permute.xlu0 0
    %1858 = vperm.xlu0 %1857, %v1055
    %v1859 = vpop.permute.xlu0 %1858
    %1860 = vset.pattern.permute.xlu0 0
    %1861 = vperm.xlu0 %1860, %v1056
    %v1862 = vpop.permute.xlu0 %1861
    %1863 = vset.pattern.permute.xlu0 0
    %1864 = vperm.xlu0 %1863, %v1057
    %v1865 = vpop.permute.xlu0 %1864
    %1866 = vset.pattern.permute.xlu0 0
    %1867 = vperm.xlu0 %1866, %v1058
    %v1868 = vpop.permute.xlu0 %1867
    %1869 = vset.pattern.permute.xlu0 0
    %1870 = vperm.xlu0 %1869, %v1059
    %v1871 = vpop.permute.xlu0 %1870
    %1872 = vset.pattern.permute.xlu0 0
    %1873 = vperm.xlu0 %1872, %v1060
    %v1874 = vpop.permute.xlu0 %1873
    %1875 = vset.pattern.permute.xlu0 0
    %1876 = vperm.xlu0 %1875, %v1061
    %v1877 = vpop.permute.xlu0 %1876
    %1878 = vset.pattern.permute.xlu0 0
    %1879 = vperm.xlu0 %1878, %v1062
    %v1880 = vpop.permute.xlu0 %1879
    %1881 = vset.pattern.permute.xlu0 0
    %1882 = vperm.xlu0 %1881, %v1063
    %v1883 = vpop.permute.xlu0 %1882
    %1884 = vset.pattern.permute.xlu0 0
    %1885 = vperm.xlu0 %1884, %v1064
    %v1886 = vpop.permute.xlu0 %1885
    %1887 = vset.pattern.permute.xlu0 0
    %1888 = vperm.xlu0 %1887, %v1065
    %v1889 = vpop.permute.xlu0 %1888
    %1890 = vset.pattern.permute.xlu0 0
    %1891 = vperm.xlu0 %1890, %v1066
    %v1892 = vpop.permute.xlu0 %1891
    %1893 = vset.pattern.permute.xlu0 0
    %1894 = vperm.xlu0 %1893, %v1067
    %v1895 = vpop.permute.xlu0 %1894
    %1896 = vset.pattern.permute.xlu0 0
    %1897 = vperm.xlu0 %1896, %v1068
    %v1898 = vpop.permute.xlu0 %1897
    %1899 = vset.pattern.permute.xlu0 0
    %1900 = vperm.xlu0 %1899, %v1069
    %v1901 = vpop.permute.xlu0 %1900
    %1902 = vset.pattern.permute.xlu0 0
    %1903 = vperm.xlu0 %1902, %v1070
    %v1904 = vpop.permute.xlu0 %1903
    %1905 = vset.pattern.permute.xlu0 0
    %1906 = vperm.xlu0 %1905, %v1071
    %v1907 = vpop.permute.xlu0 %1906
    %1908 = vset.pattern.permute.xlu0 0
    %1909 = vperm.xlu0 %1908, %v1072
    %v1910 = vpop.permute.xlu0 %1909
    %1911 = vset.pattern.permute.xlu0 0
    %1912 = vperm.xlu0 %1911, %v1073
    %v1913 = vpop.permute.xlu0 %1912
    %1914 = vset.pattern.permute.xlu0 0
    %1915 = vperm.xlu0 %1914, %v1074
    %v1916 = vpop.permute.xlu0 %1915
    %1917 = vset.pattern.permute.xlu0 0
    %1918 = vperm.xlu0 %1917, %v1075
    %v1919 = vpop.permute.xlu0 %1918
    %1920 = vset.pattern.permute.xlu0 0
    %1921 = vperm.xlu0 %1920, %v1076
    %v1922 = vpop.permute.xlu0 %1921
    %1923 = vset.pattern.permute.xlu0 0
    %1924 = vperm.xlu0 %1923, %v1077
    %v1925 = vpop.permute.xlu0 %1924
    %1926 = vset.pattern.permute.xlu0 0
    %1927 = vperm.xlu0 %1926, %v1078
    %v1928 = vpop.permute.xlu0 %1927
    %1929 = vset.pattern.permute.xlu0 0
    %1930 = vperm.xlu0 %1929, %v1079
    %v1931 = vpop.permute.xlu0 %1930
    %1932 = vset.pattern.permute.xlu0 0
    %1933 = vperm.xlu0 %1932, %v1080
    %v1934 = vpop.permute.xlu0 %1933
    %1935 = vset.pattern.permute.xlu0 0
    %1936 = vperm.xlu0 %1935, %v1081
    %v1937 = vpop.permute.xlu0 %1936
    %1938 = vset.pattern.permute.xlu0 0
    %1939 = vperm.xlu0 %1938, %v1082
    %v1940 = vpop.permute.xlu0 %1939
    %1941 = vset.pattern.permute.xlu0 0
    %1942 = vperm.xlu0 %1941, %v1083
    %v1943 = vpop.permute.xlu0 %1942
    %1944 = vset.pattern.permute.xlu0 0
    %1945 = vperm.xlu0 %1944, %v1084
    %v1946 = vpop.permute.xlu0 %1945
    %1947 = vset.pattern.permute.xlu0 0
    %1948 = vperm.xlu0 %1947, %v1085
    %v1949 = vpop.permute.xlu0 %1948
    %1950 = vset.pattern.permute.xlu0 0
    %1951 = vperm.xlu0 %1950, %v1086
    %v1952 = vpop.permute.xlu0 %1951
    %1953 = vset.pattern.permute.xlu0 0
    %1954 = vperm.xlu0 %1953, %v1087
    %v1955 = vpop.permute.xlu0 %1954
    %1956 = vset.pattern.permute.xlu0 0
    %1957 = vperm.xlu0 %1956, %v1088
    %v1958 = vpop.permute.xlu0 %1957
    %1959 = vset.pattern.permute.xlu0 0
    %1960 = vperm.xlu0 %1959, %v1089
    %v1961 = vpop.permute.xlu0 %1960
    %1962 = vset.pattern.permute.xlu0 0
    %1963 = vperm.xlu0 %1962, %v1090
    %v1964 = vpop.permute.xlu0 %1963
    %1965 = vset.pattern.permute.xlu0 0
    %1966 = vperm.xlu0 %1965, %v1091
    %v1967 = vpop.permute.xlu0 %1966
    %1968 = vset.pattern.permute.xlu0 0
    %1969 = vperm.xlu0 %1968, %v1092
    %v1970 = vpop.permute.xlu0 %1969
    %1971 = vset.pattern.permute.xlu0 0
    %1972 = vperm.xlu0 %1971, %v1093
    %v1973 = vpop.permute.xlu0 %1972
    %1974 = vset.pattern.permute.xlu0 0
    %1975 = vperm.xlu0 %1974, %v1094
    %v1976 = vpop.permute.xlu0 %1975
    %1977 = vset.pattern.permute.xlu0 0
    %1978 = vperm.xlu0 %1977, %v1095
    %v1979 = vpop.permute.xlu0 %1978
    %1980 = vset.pattern.permute.xlu0 0
    %1981 = vperm.xlu0 %1980, %v1096
    %v1982 = vpop.permute.xlu0 %1981
    %1983 = vset.pattern.permute.xlu0 0
    %1984 = vperm.xlu0 %1983, %v1097
    %v1985 = vpop.permute.xlu0 %1984
    %1986 = vset.pattern.permute.xlu0 0
    %1987 = vperm.xlu0 %1986, %v1098
    %v1988 = vpop.permute.xlu0 %1987
    %1989 = vset.pattern.permute.xlu0 0
    %1990 = vperm.xlu0 %1989, %v1099
    %v1991 = vpop.permute.xlu0 %1990
    %1992 = vset.pattern.permute.xlu0 0
    %1993 = vperm.xlu0 %1992, %v1100
    %v1994 = vpop.permute.xlu0 %1993
    %1995 = vset.pattern.permute.xlu0 0
    %1996 = vperm.xlu0 %1995, %v1101
    %v1997 = vpop.permute.xlu0 %1996
    %1998 = vset.pattern.permute.xlu0 0
    %1999 = vperm.xlu0 %1998, %v1102
    %v2000 = vpop.permute.xlu0 %1999
    %2001 = vset.pattern.permute.xlu0 0
    %2002 = vperm.xlu0 %2001, %v1103
    %v2003 = vpop.permute.xlu0 %2002
    %2004 = vset.pattern.permute.xlu0 0
    %2005 = vperm.xlu0 %2004, %v1104
    %v2006 = vpop.permute.xlu0 %2005
    %2007 = vset.pattern.permute.xlu0 0
    %2008 = vperm.xlu0 %2007, %v1105
    %v2009 = vpop.permute.xlu0 %2008
    %2010 = vset.pattern.permute.xlu0 0
    %2011 = vperm.xlu0 %2010, %v1106
    %v2012 = vpop.permute.xlu0 %2011
    %2013 = vset.pattern.permute.xlu0 0
    %2014 = vperm.xlu0 %2013, %v1107
    %v2015 = vpop.permute.xlu0 %2014
    %2016 = vset.pattern.permute.xlu0 0
    %2017 = vperm.xlu0 %2016, %v1108
    %v2018 = vpop.permute.xlu0 %2017
    %2019 = vset.pattern.permute.xlu0 0
    %2020 = vperm.xlu0 %2019, %v1109
    %v2021 = vpop.permute.xlu0 %2020
    %2022 = vset.pattern.permute.xlu0 0
    %2023 = vperm.xlu0 %2022, %v1110
    %v2024 = vpop.permute.xlu0 %2023
    %2025 = vset.pattern.permute.xlu0 0
    %2026 = vperm.xlu0 %2025, %v1111
    %v2027 = vpop.permute.xlu0 %2026
    %2028 = vset.pattern.permute.xlu0 0
    %2029 = vperm.xlu0 %2028, %v1112
    %v2030 = vpop.permute.xlu0 %2029
    %2031 = vset.pattern.permute.xlu0 0
    %2032 = vperm.xlu0 %2031, %v1113
    %v2033 = vpop.permute.xlu0 %2032
    %2034 = vset.pattern.permute.xlu0 0
    %2035 = vperm.xlu0 %2034, %v1114
    %v2036 = vpop.permute.xlu0 %2035
    %2037 = vset.pattern.permute.xlu0 0
    %2038 = vperm.xlu0 %2037, %v1115
    %v2039 = vpop.permute.xlu0 %2038
    %2040 = vset.pattern.permute.xlu0 0
    %2041 = vperm.xlu0 %2040, %v1116
    %v2042 = vpop.permute.xlu0 %2041
    %2043 = vset.pattern.permute.xlu0 0
    %2044 = vperm.xlu0 %2043, %v1117
    %v2045 = vpop.permute.xlu0 %2044
    %2046 = vset.pattern.permute.xlu0 0
    %2047 = vperm.xlu0 %2046, %v1118
    %v2048 = vpop.permute.xlu0 %2047
    %2049 = vset.pattern.permute.xlu0 0
    %2050 = vperm.xlu0 %2049, %v1119
    %v2051 = vpop.permute.xlu0 %2050
    %2052 = vset.pattern.permute.xlu0 0
    %2053 = vperm.xlu0 %2052, %v1120
    %v2054 = vpop.permute.xlu0 %2053
    %2055 = vset.pattern.permute.xlu0 0
    %2056 = vperm.xlu0 %2055, %v1121
    %v2057 = vpop.permute.xlu0 %2056
    %2058 = vset.pattern.permute.xlu0 0
    %2059 = vperm.xlu0 %2058, %v1122
    %v2060 = vpop.permute.xlu0 %2059
    %2061 = vset.pattern.permute.xlu0 0
    %2062 = vperm.xlu0 %2061, %v1123
    %v2063 = vpop.permute.xlu0 %2062
    %2064 = vset.pattern.permute.xlu0 0
    %2065 = vperm.xlu0 %2064, %v1124
    %v2066 = vpop.permute.xlu0 %2065
    %2067 = vset.pattern.permute.xlu0 0
    %2068 = vperm.xlu0 %2067, %v1125
    %v2069 = vpop.permute.xlu0 %2068
    %2070 = vset.pattern.permute.xlu0 0
    %2071 = vperm.xlu0 %2070, %v1126
    %v2072 = vpop.permute.xlu0 %2071
    %2073 = vset.pattern.permute.xlu0 0
    %2074 = vperm.xlu0 %2073, %v1127
    %v2075 = vpop.permute.xlu0 %2074
    %2076 = vset.pattern.permute.xlu0 0
    %2077 = vperm.xlu0 %2076, %v1128
    %v2078 = vpop.permute.xlu0 %2077
    %2079 = vset.pattern.permute.xlu0 0
    %2080 = vperm.xlu0 %2079, %v1129
    %v2081 = vpop.permute.xlu0 %2080
    %2082 = vset.pattern.permute.xlu0 0
    %2083 = vperm.xlu0 %2082, %v1130
    %v2084 = vpop.permute.xlu0 %2083
    %2085 = vset.pattern.permute.xlu0 0
    %2086 = vperm.xlu0 %2085, %v1131
    %v2087 = vpop.permute.xlu0 %2086
    %2088 = vset.pattern.permute.xlu0 0
    %2089 = vperm.xlu0 %2088, %v1132
    %v2090 = vpop.permute.xlu0 %2089
    %2091 = vset.pattern.permute.xlu0 0
    %2092 = vperm.xlu0 %2091, %v1133
    %v2093 = vpop.permute.xlu0 %2092
    %2094 = vset.pattern.permute.xlu0 0
    %2095 = vperm.xlu0 %2094, %v1134
    %v2096 = vpop.permute.xlu0 %2095
    %2097 = vset.pattern.permute.xlu0 0
    %2098 = vperm.xlu0 %2097, %v1135
    %v2099 = vpop.permute.xlu0 %2098
    %2100 = vset.pattern.permute.xlu0 0
    %2101 = vperm.xlu0 %2100, %v1136
    %v2102 = vpop.permute.xlu0 %2101
    %2103 = vset.pattern.permute.xlu0 0
    %2104 = vperm.xlu0 %2103, %v1137
    %v2105 = vpop.permute.xlu0 %2104
    %2106 = vset.pattern.permute.xlu0 0
    %2107 = vperm.xlu0 %2106, %v1138
    %v2108 = vpop.permute.xlu0 %2107
    %2109 = vset.pattern.permute.xlu0 0
    %2110 = vperm.xlu0 %2109, %v1139
    %v2111 = vpop.permute.xlu0 %2110
    %2112 = vset.pattern.permute.xlu0 0
    %2113 = vperm.xlu0 %2112, %v1140
    %v2114 = vpop.permute.xlu0 %2113
    %2115 = vset.pattern.permute.xlu0 0
    %2116 = vperm.xlu0 %2115, %v1141
    %v2117 = vpop.permute.xlu0 %2116
    %2118 = vset.pattern.permute.xlu0 0
    %2119 = vperm.xlu0 %2118, %v1142
    %v2120 = vpop.permute.xlu0 %2119
    %2121 = vset.pattern.permute.xlu0 0
    %2122 = vperm.xlu0 %2121, %v1143
    %v2123 = vpop.permute.xlu0 %2122
    %2124 = vset.pattern.permute.xlu0 0
    %2125 = vperm.xlu0 %2124, %v1144
    %v2126 = vpop.permute.xlu0 %2125
    %2127 = vset.pattern.permute.xlu0 0
    %2128 = vperm.xlu0 %2127, %v1145
    %v2129 = vpop.permute.xlu0 %2128
    %2130 = vset.pattern.permute.xlu0 0
    %2131 = vperm.xlu0 %2130, %v1146
    %v2132 = vpop.permute.xlu0 %2131
    %2133 = vset.pattern.permute.xlu0 0
    %2134 = vperm.xlu0 %2133, %v1147
    %v2135 = vpop.permute.xlu0 %2134
    %2136 = vset.pattern.permute.xlu0 0
    %2137 = vperm.xlu0 %2136, %v1148
    %v2138 = vpop.permute.xlu0 %2137
    %2139 = vset.pattern.permute.xlu0 0
    %2140 = vperm.xlu0 %2139, %v1149
    %v2141 = vpop.permute.xlu0 %2140
    %2142 = vset.pattern.permute.xlu0 0
    %2143 = vperm.xlu0 %2142, %v1150
    %v2144 = vpop.permute.xlu0 %2143
    %2145 = vset.pattern.permute.xlu0 0
    %2146 = vperm.xlu0 %2145, %v1151
    %v2147 = vpop.permute.xlu0 %2146
    %2148 = vset.pattern.permute.xlu0 0
    %2149 = vperm.xlu0 %2148, %v1152
    %v2150 = vpop.permute.xlu0 %2149
    %2151 = vset.pattern.permute.xlu0 0
    %2152 = vperm.xlu0 %2151, %v1153
    %v2153 = vpop.permute.xlu0 %2152
    %2154 = vset.pattern.permute.xlu0 0
    %2155 = vperm.xlu0 %2154, %v1154
    %v2156 = vpop.permute.xlu0 %2155
    %2157 = vset.pattern.permute.xlu0 0
    %2158 = vperm.xlu0 %2157, %v1155
    %v2159 = vpop.permute.xlu0 %2158
    %2160 = vset.pattern.permute.xlu0 0
    %2161 = vperm.xlu0 %2160, %v1156
    %v2162 = vpop.permute.xlu0 %2161
    %2163 = vset.pattern.permute.xlu0 0
    %2164 = vperm.xlu0 %2163, %v1157
    %v2165 = vpop.permute.xlu0 %2164
    %2166 = vset.pattern.permute.xlu0 0
    %2167 = vperm.xlu0 %2166, %v1158
    %v2168 = vpop.permute.xlu0 %2167
    %2169 = vset.pattern.permute.xlu0 0
    %2170 = vperm.xlu0 %2169, %v1159
    %v2171 = vpop.permute.xlu0 %2170
    %2172 = vset.pattern.permute.xlu0 0
    %2173 = vperm.xlu0 %2172, %v1160
    %v2174 = vpop.permute.xlu0 %2173
    %2175 = vset.pattern.permute.xlu0 0
    %2176 = vperm.xlu0 %2175, %v1161
    %v2177 = vpop.permute.xlu0 %2176
    %2178 = vset.pattern.permute.xlu0 0
    %2179 = vperm.xlu0 %2178, %v1162
    %v2180 = vpop.permute.xlu0 %2179
    %2181 = vset.pattern.permute.xlu0 0
    %2182 = vperm.xlu0 %2181, %v1163
    %v2183 = vpop.permute.xlu0 %2182
    %2184 = vset.pattern.permute.xlu0 0
    %2185 = vperm.xlu0 %2184, %v1164
    %v2186 = vpop.permute.xlu0 %2185
    %2187 = vset.pattern.permute.xlu0 0
    %2188 = vperm.xlu0 %2187, %v1165
    %v2189 = vpop.permute.xlu0 %2188
    %v2190 = vlaneseq
    %v2191 = vand.u32 %v2190, 127
    %v2192 = vlaneseq
    %v2193 = vshrl.u32 %v2192, 7
    %v2194 = vsub.s32 %v2191, %v2193
    %v2195 = vrot.slane %v1424, %v2194
    %v2196 = vadd.s32 %v2191, 4294967288
    %v2197 = vlaneseq
    %v2198 = vshrl.u32 %v2197, 7
    %v2199 = vsub.s32 %v2196, %v2198
    %v2200 = vrot.slane %v1427, %v2199
    %vm2201 = vcmask 130112
    %v2202 = vsel %vm2201, %v2200, %v2195
    %v2203 = vadd.s32 %v2191, 4294967280
    %v2204 = vlaneseq
    %v2205 = vshrl.u32 %v2204, 7
    %v2206 = vsub.s32 %v2203, %v2205
    %v2207 = vrot.slane %v1430, %v2206
    %vm2208 = vcmask 195712
    %v2209 = vsel %vm2208, %v2207, %v2202
    %v2210 = vadd.s32 %v2191, 4294967272
    %v2211 = vlaneseq
    %v2212 = vshrl.u32 %v2211, 7
    %v2213 = vsub.s32 %v2210, %v2212
    %v2214 = vrot.slane %v1433, %v2213
    %vm2215 = vcmask 261312
    %v2216 = vsel %vm2215, %v2214, %v2209
    %v2217 = vadd.s32 %v2191, 4294967264
    %v2218 = vlaneseq
    %v2219 = vshrl.u32 %v2218, 7
    %v2220 = vsub.s32 %v2217, %v2219
    %v2221 = vrot.slane %v1436, %v2220
    %vm2222 = vcmask 326912
    %v2223 = vsel %vm2222, %v2221, %v2216
    %v2224 = vadd.s32 %v2191, 4294967256
    %v2225 = vlaneseq
    %v2226 = vshrl.u32 %v2225, 7
    %v2227 = vsub.s32 %v2224, %v2226
    %v2228 = vrot.slane %v1439, %v2227
    %vm2229 = vcmask 392512
    %v2230 = vsel %vm2229, %v2228, %v2223
    %v2231 = vadd.s32 %v2191, 4294967248
    %v2232 = vlaneseq
    %v2233 = vshrl.u32 %v2232, 7
    %v2234 = vsub.s32 %v2231, %v2233
    %v2235 = vrot.slane %v1442, %v2234
    %vm2236 = vcmask 458112
    %v2237 = vsel %vm2236, %v2235, %v2230
    %v2238 = vadd.s32 %v2191, 4294967240
    %v2239 = vlaneseq
    %v2240 = vshrl.u32 %v2239, 7
    %v2241 = vsub.s32 %v2238, %v2240
    %v2242 = vrot.slane %v1445, %v2241
    %vm2243 = vcmask 523712
    %v2244 = vsel %vm2243, %v2242, %v2237
    %v2245 = vadd.s32 %v2191, 4294967232
    %v2246 = vlaneseq
    %v2247 = vshrl.u32 %v2246, 7
    %v2248 = vsub.s32 %v2245, %v2247
    %v2249 = vrot.slane %v1448, %v2248
    %vm2250 = vcmask 589312
    %v2251 = vsel %vm2250, %v2249, %v2244
    %v2252 = vadd.s32 %v2191, 4294967224
    %v2253 = vlaneseq
    %v2254 = vshrl.u32 %v2253, 7
    %v2255 = vsub.s32 %v2252, %v2254
    %v2256 = vrot.slane %v1451, %v2255
    %vm2257 = vcmask 654912
    %v2258 = vsel %vm2257, %v2256, %v2251
    %v2259 = vadd.s32 %v2191, 4294967216
    %v2260 = vlaneseq
    %v2261 = vshrl.u32 %v2260, 7
    %v2262 = vsub.s32 %v2259, %v2261
    %v2263 = vrot.slane %v1454, %v2262
    %vm2264 = vcmask 720512
    %v2265 = vsel %vm2264, %v2263, %v2258
    %v2266 = vadd.s32 %v2191, 4294967208
    %v2267 = vlaneseq
    %v2268 = vshrl.u32 %v2267, 7
    %v2269 = vsub.s32 %v2266, %v2268
    %v2270 = vrot.slane %v1457, %v2269
    %vm2271 = vcmask 786112
    %v2272 = vsel %vm2271, %v2270, %v2265
    %v2273 = vadd.s32 %v2191, 4294967200
    %v2274 = vlaneseq
    %v2275 = vshrl.u32 %v2274, 7
    %v2276 = vsub.s32 %v2273, %v2275
    %v2277 = vrot.slane %v1460, %v2276
    %vm2278 = vcmask 851712
    %v2279 = vsel %vm2278, %v2277, %v2272
    %v2280 = vadd.s32 %v2191, 4294967192
    %v2281 = vlaneseq
    %v2282 = vshrl.u32 %v2281, 7
    %v2283 = vsub.s32 %v2280, %v2282
    %v2284 = vrot.slane %v1463, %v2283
    %vm2285 = vcmask 917312
    %v2286 = vsel %vm2285, %v2284, %v2279
    %v2287 = vadd.s32 %v2191, 4294967184
    %v2288 = vlaneseq
    %v2289 = vshrl.u32 %v2288, 7
    %v2290 = vsub.s32 %v2287, %v2289
    %v2291 = vrot.slane %v1466, %v2290
    %vm2292 = vcmask 982912
    %v2293 = vsel %vm2292, %v2291, %v2286
    %v2294 = vadd.s32 %v2191, 4294967176
    %v2295 = vlaneseq
    %v2296 = vshrl.u32 %v2295, 7
    %v2297 = vsub.s32 %v2294, %v2296
    %v2298 = vrot.slane %v1469, %v2297
    %vm2299 = vcmask 1048512
    %v2300 = vsel %vm2299, %v2298, %v2293
    %v2301 = vlaneseq
    %v2302 = vshrl.u32 %v2301, 7
    %v2303 = vsub.s32 %v2191, %v2302
    %v2304 = vrot.slane %v1472, %v2303
    %v2305 = vlaneseq
    %v2306 = vshrl.u32 %v2305, 7
    %v2307 = vsub.s32 %v2196, %v2306
    %v2308 = vrot.slane %v1475, %v2307
    %v2309 = vsel %vm2201, %v2308, %v2304
    %v2310 = vlaneseq
    %v2311 = vshrl.u32 %v2310, 7
    %v2312 = vsub.s32 %v2203, %v2311
    %v2313 = vrot.slane %v1478, %v2312
    %v2314 = vsel %vm2208, %v2313, %v2309
    %v2315 = vlaneseq
    %v2316 = vshrl.u32 %v2315, 7
    %v2317 = vsub.s32 %v2210, %v2316
    %v2318 = vrot.slane %v1481, %v2317
    %v2319 = vsel %vm2215, %v2318, %v2314
    %v2320 = vlaneseq
    %v2321 = vshrl.u32 %v2320, 7
    %v2322 = vsub.s32 %v2217, %v2321
    %v2323 = vrot.slane %v1484, %v2322
    %v2324 = vsel %vm2222, %v2323, %v2319
    %v2325 = vlaneseq
    %v2326 = vshrl.u32 %v2325, 7
    %v2327 = vsub.s32 %v2224, %v2326
    %v2328 = vrot.slane %v1487, %v2327
    %v2329 = vsel %vm2229, %v2328, %v2324
    %v2330 = vlaneseq
    %v2331 = vshrl.u32 %v2330, 7
    %v2332 = vsub.s32 %v2231, %v2331
    %v2333 = vrot.slane %v1490, %v2332
    %v2334 = vsel %vm2236, %v2333, %v2329
    %v2335 = vlaneseq
    %v2336 = vshrl.u32 %v2335, 7
    %v2337 = vsub.s32 %v2238, %v2336
    %v2338 = vrot.slane %v1493, %v2337
    %v2339 = vsel %vm2243, %v2338, %v2334
    %v2340 = vlaneseq
    %v2341 = vshrl.u32 %v2340, 7
    %v2342 = vsub.s32 %v2245, %v2341
    %v2343 = vrot.slane %v1496, %v2342
    %v2344 = vsel %vm2250, %v2343, %v2339
    %v2345 = vlaneseq
    %v2346 = vshrl.u32 %v2345, 7
    %v2347 = vsub.s32 %v2252, %v2346
    %v2348 = vrot.slane %v1499, %v2347
    %v2349 = vsel %vm2257, %v2348, %v2344
    %v2350 = vlaneseq
    %v2351 = vshrl.u32 %v2350, 7
    %v2352 = vsub.s32 %v2259, %v2351
    %v2353 = vrot.slane %v1502, %v2352
    %v2354 = vsel %vm2264, %v2353, %v2349
    %v2355 = vlaneseq
    %v2356 = vshrl.u32 %v2355, 7
    %v2357 = vsub.s32 %v2266, %v2356
    %v2358 = vrot.slane %v1505, %v2357
    %v2359 = vsel %vm2271, %v2358, %v2354
    %v2360 = vlaneseq
    %v2361 = vshrl.u32 %v2360, 7
    %v2362 = vsub.s32 %v2273, %v2361
    %v2363 = vrot.slane %v1508, %v2362
    %v2364 = vsel %vm2278, %v2363, %v2359
    %v2365 = vlaneseq
    %v2366 = vshrl.u32 %v2365, 7
    %v2367 = vsub.s32 %v2280, %v2366
    %v2368 = vrot.slane %v1511, %v2367
    %v2369 = vsel %vm2285, %v2368, %v2364
    %v2370 = vlaneseq
    %v2371 = vshrl.u32 %v2370, 7
    %v2372 = vsub.s32 %v2287, %v2371
    %v2373 = vrot.slane %v1514, %v2372
    %v2374 = vsel %vm2292, %v2373, %v2369
    %v2375 = vlaneseq
    %v2376 = vshrl.u32 %v2375, 7
    %v2377 = vsub.s32 %v2294, %v2376
    %v2378 = vrot.slane %v1517, %v2377
    %v2379 = vsel %vm2299, %v2378, %v2374
    %v2380 = vlaneseq
    %v2381 = vshrl.u32 %v2380, 7
    %v2382 = vsub.s32 %v2191, %v2381
    %v2383 = vrot.slane %v1520, %v2382
    %v2384 = vlaneseq
    %v2385 = vshrl.u32 %v2384, 7
    %v2386 = vsub.s32 %v2196, %v2385
    %v2387 = vrot.slane %v1523, %v2386
    %v2388 = vsel %vm2201, %v2387, %v2383
    %v2389 = vlaneseq
    %v2390 = vshrl.u32 %v2389, 7
    %v2391 = vsub.s32 %v2203, %v2390
    %v2392 = vrot.slane %v1526, %v2391
    %v2393 = vsel %vm2208, %v2392, %v2388
    %v2394 = vlaneseq
    %v2395 = vshrl.u32 %v2394, 7
    %v2396 = vsub.s32 %v2210, %v2395
    %v2397 = vrot.slane %v1529, %v2396
    %v2398 = vsel %vm2215, %v2397, %v2393
    %v2399 = vlaneseq
    %v2400 = vshrl.u32 %v2399, 7
    %v2401 = vsub.s32 %v2217, %v2400
    %v2402 = vrot.slane %v1532, %v2401
    %v2403 = vsel %vm2222, %v2402, %v2398
    %v2404 = vlaneseq
    %v2405 = vshrl.u32 %v2404, 7
    %v2406 = vsub.s32 %v2224, %v2405
    %v2407 = vrot.slane %v1535, %v2406
    %v2408 = vsel %vm2229, %v2407, %v2403
    %v2409 = vlaneseq
    %v2410 = vshrl.u32 %v2409, 7
    %v2411 = vsub.s32 %v2231, %v2410
    %v2412 = vrot.slane %v1538, %v2411
    %v2413 = vsel %vm2236, %v2412, %v2408
    %v2414 = vlaneseq
    %v2415 = vshrl.u32 %v2414, 7
    %v2416 = vsub.s32 %v2238, %v2415
    %v2417 = vrot.slane %v1541, %v2416
    %v2418 = vsel %vm2243, %v2417, %v2413
    %v2419 = vlaneseq
    %v2420 = vshrl.u32 %v2419, 7
    %v2421 = vsub.s32 %v2245, %v2420
    %v2422 = vrot.slane %v1544, %v2421
    %v2423 = vsel %vm2250, %v2422, %v2418
    %v2424 = vlaneseq
    %v2425 = vshrl.u32 %v2424, 7
    %v2426 = vsub.s32 %v2252, %v2425
    %v2427 = vrot.slane %v1547, %v2426
    %v2428 = vsel %vm2257, %v2427, %v2423
    %v2429 = vlaneseq
    %v2430 = vshrl.u32 %v2429, 7
    %v2431 = vsub.s32 %v2259, %v2430
    %v2432 = vrot.slane %v1550, %v2431
    %v2433 = vsel %vm2264, %v2432, %v2428
    %v2434 = vlaneseq
    %v2435 = vshrl.u32 %v2434, 7
    %v2436 = vsub.s32 %v2266, %v2435
    %v2437 = vrot.slane %v1553, %v2436
    %v2438 = vsel %vm2271, %v2437, %v2433
    %v2439 = vlaneseq
    %v2440 = vshrl.u32 %v2439, 7
    %v2441 = vsub.s32 %v2273, %v2440
    %v2442 = vrot.slane %v1556, %v2441
    %v2443 = vsel %vm2278, %v2442, %v2438
    %v2444 = vlaneseq
    %v2445 = vshrl.u32 %v2444, 7
    %v2446 = vsub.s32 %v2280, %v2445
    %v2447 = vrot.slane %v1559, %v2446
    %v2448 = vsel %vm2285, %v2447, %v2443
    %v2449 = vlaneseq
    %v2450 = vshrl.u32 %v2449, 7
    %v2451 = vsub.s32 %v2287, %v2450
    %v2452 = vrot.slane %v1562, %v2451
    %v2453 = vsel %vm2292, %v2452, %v2448
    %v2454 = vlaneseq
    %v2455 = vshrl.u32 %v2454, 7
    %v2456 = vsub.s32 %v2294, %v2455
    %v2457 = vrot.slane %v1565, %v2456
    %v2458 = vsel %vm2299, %v2457, %v2453
    %v2459 = vlaneseq
    %v2460 = vshrl.u32 %v2459, 7
    %v2461 = vsub.s32 %v2191, %v2460
    %v2462 = vrot.slane %v1568, %v2461
    %v2463 = vlaneseq
    %v2464 = vshrl.u32 %v2463, 7
    %v2465 = vsub.s32 %v2196, %v2464
    %v2466 = vrot.slane %v1571, %v2465
    %v2467 = vsel %vm2201, %v2466, %v2462
    %v2468 = vlaneseq
    %v2469 = vshrl.u32 %v2468, 7
    %v2470 = vsub.s32 %v2203, %v2469
    %v2471 = vrot.slane %v1574, %v2470
    %v2472 = vsel %vm2208, %v2471, %v2467
    %v2473 = vlaneseq
    %v2474 = vshrl.u32 %v2473, 7
    %v2475 = vsub.s32 %v2210, %v2474
    %v2476 = vrot.slane %v1577, %v2475
    %v2477 = vsel %vm2215, %v2476, %v2472
    %v2478 = vlaneseq
    %v2479 = vshrl.u32 %v2478, 7
    %v2480 = vsub.s32 %v2217, %v2479
    %v2481 = vrot.slane %v1580, %v2480
    %v2482 = vsel %vm2222, %v2481, %v2477
    %v2483 = vlaneseq
    %v2484 = vshrl.u32 %v2483, 7
    %v2485 = vsub.s32 %v2224, %v2484
    %v2486 = vrot.slane %v1583, %v2485
    %v2487 = vsel %vm2229, %v2486, %v2482
    %v2488 = vlaneseq
    %v2489 = vshrl.u32 %v2488, 7
    %v2490 = vsub.s32 %v2231, %v2489
    %v2491 = vrot.slane %v1586, %v2490
    %v2492 = vsel %vm2236, %v2491, %v2487
    %v2493 = vlaneseq
    %v2494 = vshrl.u32 %v2493, 7
    %v2495 = vsub.s32 %v2238, %v2494
    %v2496 = vrot.slane %v1589, %v2495
    %v2497 = vsel %vm2243, %v2496, %v2492
    %v2498 = vlaneseq
    %v2499 = vshrl.u32 %v2498, 7
    %v2500 = vsub.s32 %v2245, %v2499
    %v2501 = vrot.slane %v1592, %v2500
    %v2502 = vsel %vm2250, %v2501, %v2497
    %v2503 = vlaneseq
    %v2504 = vshrl.u32 %v2503, 7
    %v2505 = vsub.s32 %v2252, %v2504
    %v2506 = vrot.slane %v1595, %v2505
    %v2507 = vsel %vm2257, %v2506, %v2502
    %v2508 = vlaneseq
    %v2509 = vshrl.u32 %v2508, 7
    %v2510 = vsub.s32 %v2259, %v2509
    %v2511 = vrot.slane %v1598, %v2510
    %v2512 = vsel %vm2264, %v2511, %v2507
    %v2513 = vlaneseq
    %v2514 = vshrl.u32 %v2513, 7
    %v2515 = vsub.s32 %v2266, %v2514
    %v2516 = vrot.slane %v1601, %v2515
    %v2517 = vsel %vm2271, %v2516, %v2512
    %v2518 = vlaneseq
    %v2519 = vshrl.u32 %v2518, 7
    %v2520 = vsub.s32 %v2273, %v2519
    %v2521 = vrot.slane %v1604, %v2520
    %v2522 = vsel %vm2278, %v2521, %v2517
    %v2523 = vlaneseq
    %v2524 = vshrl.u32 %v2523, 7
    %v2525 = vsub.s32 %v2280, %v2524
    %v2526 = vrot.slane %v1607, %v2525
    %v2527 = vsel %vm2285, %v2526, %v2522
    %v2528 = vlaneseq
    %v2529 = vshrl.u32 %v2528, 7
    %v2530 = vsub.s32 %v2287, %v2529
    %v2531 = vrot.slane %v1610, %v2530
    %v2532 = vsel %vm2292, %v2531, %v2527
    %v2533 = vlaneseq
    %v2534 = vshrl.u32 %v2533, 7
    %v2535 = vsub.s32 %v2294, %v2534
    %v2536 = vrot.slane %v1613, %v2535
    %v2537 = vsel %vm2299, %v2536, %v2532
    %v2538 = vlaneseq
    %v2539 = vshrl.u32 %v2538, 7
    %v2540 = vsub.s32 %v2191, %v2539
    %v2541 = vrot.slane %v1616, %v2540
    %v2542 = vlaneseq
    %v2543 = vshrl.u32 %v2542, 7
    %v2544 = vsub.s32 %v2196, %v2543
    %v2545 = vrot.slane %v1619, %v2544
    %v2546 = vsel %vm2201, %v2545, %v2541
    %v2547 = vlaneseq
    %v2548 = vshrl.u32 %v2547, 7
    %v2549 = vsub.s32 %v2203, %v2548
    %v2550 = vrot.slane %v1622, %v2549
    %v2551 = vsel %vm2208, %v2550, %v2546
    %v2552 = vlaneseq
    %v2553 = vshrl.u32 %v2552, 7
    %v2554 = vsub.s32 %v2210, %v2553
    %v2555 = vrot.slane %v1625, %v2554
    %v2556 = vsel %vm2215, %v2555, %v2551
    %v2557 = vlaneseq
    %v2558 = vshrl.u32 %v2557, 7
    %v2559 = vsub.s32 %v2217, %v2558
    %v2560 = vrot.slane %v1628, %v2559
    %v2561 = vsel %vm2222, %v2560, %v2556
    %v2562 = vlaneseq
    %v2563 = vshrl.u32 %v2562, 7
    %v2564 = vsub.s32 %v2224, %v2563
    %v2565 = vrot.slane %v1631, %v2564
    %v2566 = vsel %vm2229, %v2565, %v2561
    %v2567 = vlaneseq
    %v2568 = vshrl.u32 %v2567, 7
    %v2569 = vsub.s32 %v2231, %v2568
    %v2570 = vrot.slane %v1634, %v2569
    %v2571 = vsel %vm2236, %v2570, %v2566
    %v2572 = vlaneseq
    %v2573 = vshrl.u32 %v2572, 7
    %v2574 = vsub.s32 %v2238, %v2573
    %v2575 = vrot.slane %v1637, %v2574
    %v2576 = vsel %vm2243, %v2575, %v2571
    %v2577 = vlaneseq
    %v2578 = vshrl.u32 %v2577, 7
    %v2579 = vsub.s32 %v2245, %v2578
    %v2580 = vrot.slane %v1640, %v2579
    %v2581 = vsel %vm2250, %v2580, %v2576
    %v2582 = vlaneseq
    %v2583 = vshrl.u32 %v2582, 7
    %v2584 = vsub.s32 %v2252, %v2583
    %v2585 = vrot.slane %v1643, %v2584
    %v2586 = vsel %vm2257, %v2585, %v2581
    %v2587 = vlaneseq
    %v2588 = vshrl.u32 %v2587, 7
    %v2589 = vsub.s32 %v2259, %v2588
    %v2590 = vrot.slane %v1646, %v2589
    %v2591 = vsel %vm2264, %v2590, %v2586
    %v2592 = vlaneseq
    %v2593 = vshrl.u32 %v2592, 7
    %v2594 = vsub.s32 %v2266, %v2593
    %v2595 = vrot.slane %v1649, %v2594
    %v2596 = vsel %vm2271, %v2595, %v2591
    %v2597 = vlaneseq
    %v2598 = vshrl.u32 %v2597, 7
    %v2599 = vsub.s32 %v2273, %v2598
    %v2600 = vrot.slane %v1652, %v2599
    %v2601 = vsel %vm2278, %v2600, %v2596
    %v2602 = vlaneseq
    %v2603 = vshrl.u32 %v2602, 7
    %v2604 = vsub.s32 %v2280, %v2603
    %v2605 = vrot.slane %v1655, %v2604
    %v2606 = vsel %vm2285, %v2605, %v2601
    %v2607 = vlaneseq
    %v2608 = vshrl.u32 %v2607, 7
    %v2609 = vsub.s32 %v2287, %v2608
    %v2610 = vrot.slane %v1658, %v2609
    %v2611 = vsel %vm2292, %v2610, %v2606
    %v2612 = vlaneseq
    %v2613 = vshrl.u32 %v2612, 7
    %v2614 = vsub.s32 %v2294, %v2613
    %v2615 = vrot.slane %v1661, %v2614
    %v2616 = vsel %vm2299, %v2615, %v2611
    %v2617 = vlaneseq
    %v2618 = vshrl.u32 %v2617, 7
    %v2619 = vsub.s32 %v2191, %v2618
    %v2620 = vrot.slane %v1664, %v2619
    %v2621 = vlaneseq
    %v2622 = vshrl.u32 %v2621, 7
    %v2623 = vsub.s32 %v2196, %v2622
    %v2624 = vrot.slane %v1667, %v2623
    %v2625 = vsel %vm2201, %v2624, %v2620
    %v2626 = vlaneseq
    %v2627 = vshrl.u32 %v2626, 7
    %v2628 = vsub.s32 %v2203, %v2627
    %v2629 = vrot.slane %v1670, %v2628
    %v2630 = vsel %vm2208, %v2629, %v2625
    %v2631 = vlaneseq
    %v2632 = vshrl.u32 %v2631, 7
    %v2633 = vsub.s32 %v2210, %v2632
    %v2634 = vrot.slane %v1673, %v2633
    %v2635 = vsel %vm2215, %v2634, %v2630
    %v2636 = vlaneseq
    %v2637 = vshrl.u32 %v2636, 7
    %v2638 = vsub.s32 %v2217, %v2637
    %v2639 = vrot.slane %v1676, %v2638
    %v2640 = vsel %vm2222, %v2639, %v2635
    %v2641 = vlaneseq
    %v2642 = vshrl.u32 %v2641, 7
    %v2643 = vsub.s32 %v2224, %v2642
    %v2644 = vrot.slane %v1679, %v2643
    %v2645 = vsel %vm2229, %v2644, %v2640
    %v2646 = vlaneseq
    %v2647 = vshrl.u32 %v2646, 7
    %v2648 = vsub.s32 %v2231, %v2647
    %v2649 = vrot.slane %v1682, %v2648
    %v2650 = vsel %vm2236, %v2649, %v2645
    %v2651 = vlaneseq
    %v2652 = vshrl.u32 %v2651, 7
    %v2653 = vsub.s32 %v2238, %v2652
    %v2654 = vrot.slane %v1685, %v2653
    %v2655 = vsel %vm2243, %v2654, %v2650
    %v2656 = vlaneseq
    %v2657 = vshrl.u32 %v2656, 7
    %v2658 = vsub.s32 %v2245, %v2657
    %v2659 = vrot.slane %v1688, %v2658
    %v2660 = vsel %vm2250, %v2659, %v2655
    %v2661 = vlaneseq
    %v2662 = vshrl.u32 %v2661, 7
    %v2663 = vsub.s32 %v2252, %v2662
    %v2664 = vrot.slane %v1691, %v2663
    %v2665 = vsel %vm2257, %v2664, %v2660
    %v2666 = vlaneseq
    %v2667 = vshrl.u32 %v2666, 7
    %v2668 = vsub.s32 %v2259, %v2667
    %v2669 = vrot.slane %v1694, %v2668
    %v2670 = vsel %vm2264, %v2669, %v2665
    %v2671 = vlaneseq
    %v2672 = vshrl.u32 %v2671, 7
    %v2673 = vsub.s32 %v2266, %v2672
    %v2674 = vrot.slane %v1697, %v2673
    %v2675 = vsel %vm2271, %v2674, %v2670
    %v2676 = vlaneseq
    %v2677 = vshrl.u32 %v2676, 7
    %v2678 = vsub.s32 %v2273, %v2677
    %v2679 = vrot.slane %v1700, %v2678
    %v2680 = vsel %vm2278, %v2679, %v2675
    %v2681 = vlaneseq
    %v2682 = vshrl.u32 %v2681, 7
    %v2683 = vsub.s32 %v2280, %v2682
    %v2684 = vrot.slane %v1703, %v2683
    %v2685 = vsel %vm2285, %v2684, %v2680
    %v2686 = vlaneseq
    %v2687 = vshrl.u32 %v2686, 7
    %v2688 = vsub.s32 %v2287, %v2687
    %v2689 = vrot.slane %v1706, %v2688
    %v2690 = vsel %vm2292, %v2689, %v2685
    %v2691 = vlaneseq
    %v2692 = vshrl.u32 %v2691, 7
    %v2693 = vsub.s32 %v2294, %v2692
    %v2694 = vrot.slane %v1709, %v2693
    %v2695 = vsel %vm2299, %v2694, %v2690
    %v2696 = vlaneseq
    %v2697 = vshrl.u32 %v2696, 7
    %v2698 = vsub.s32 %v2191, %v2697
    %v2699 = vrot.slane %v1712, %v2698
    %v2700 = vlaneseq
    %v2701 = vshrl.u32 %v2700, 7
    %v2702 = vsub.s32 %v2196, %v2701
    %v2703 = vrot.slane %v1715, %v2702
    %v2704 = vsel %vm2201, %v2703, %v2699
    %v2705 = vlaneseq
    %v2706 = vshrl.u32 %v2705, 7
    %v2707 = vsub.s32 %v2203, %v2706
    %v2708 = vrot.slane %v1718, %v2707
    %v2709 = vsel %vm2208, %v2708, %v2704
    %v2710 = vlaneseq
    %v2711 = vshrl.u32 %v2710, 7
    %v2712 = vsub.s32 %v2210, %v2711
    %v2713 = vrot.slane %v1721, %v2712
    %v2714 = vsel %vm2215, %v2713, %v2709
    %v2715 = vlaneseq
    %v2716 = vshrl.u32 %v2715, 7
    %v2717 = vsub.s32 %v2217, %v2716
    %v2718 = vrot.slane %v1724, %v2717
    %v2719 = vsel %vm2222, %v2718, %v2714
    %v2720 = vlaneseq
    %v2721 = vshrl.u32 %v2720, 7
    %v2722 = vsub.s32 %v2224, %v2721
    %v2723 = vrot.slane %v1727, %v2722
    %v2724 = vsel %vm2229, %v2723, %v2719
    %v2725 = vlaneseq
    %v2726 = vshrl.u32 %v2725, 7
    %v2727 = vsub.s32 %v2231, %v2726
    %v2728 = vrot.slane %v1730, %v2727
    %v2729 = vsel %vm2236, %v2728, %v2724
    %v2730 = vlaneseq
    %v2731 = vshrl.u32 %v2730, 7
    %v2732 = vsub.s32 %v2238, %v2731
    %v2733 = vrot.slane %v1733, %v2732
    %v2734 = vsel %vm2243, %v2733, %v2729
    %v2735 = vlaneseq
    %v2736 = vshrl.u32 %v2735, 7
    %v2737 = vsub.s32 %v2245, %v2736
    %v2738 = vrot.slane %v1736, %v2737
    %v2739 = vsel %vm2250, %v2738, %v2734
    %v2740 = vlaneseq
    %v2741 = vshrl.u32 %v2740, 7
    %v2742 = vsub.s32 %v2252, %v2741
    %v2743 = vrot.slane %v1739, %v2742
    %v2744 = vsel %vm2257, %v2743, %v2739
    %v2745 = vlaneseq
    %v2746 = vshrl.u32 %v2745, 7
    %v2747 = vsub.s32 %v2259, %v2746
    %v2748 = vrot.slane %v1742, %v2747
    %v2749 = vsel %vm2264, %v2748, %v2744
    %v2750 = vlaneseq
    %v2751 = vshrl.u32 %v2750, 7
    %v2752 = vsub.s32 %v2266, %v2751
    %v2753 = vrot.slane %v1745, %v2752
    %v2754 = vsel %vm2271, %v2753, %v2749
    %v2755 = vlaneseq
    %v2756 = vshrl.u32 %v2755, 7
    %v2757 = vsub.s32 %v2273, %v2756
    %v2758 = vrot.slane %v1748, %v2757
    %v2759 = vsel %vm2278, %v2758, %v2754
    %v2760 = vlaneseq
    %v2761 = vshrl.u32 %v2760, 7
    %v2762 = vsub.s32 %v2280, %v2761
    %v2763 = vrot.slane %v1751, %v2762
    %v2764 = vsel %vm2285, %v2763, %v2759
    %v2765 = vlaneseq
    %v2766 = vshrl.u32 %v2765, 7
    %v2767 = vsub.s32 %v2287, %v2766
    %v2768 = vrot.slane %v1754, %v2767
    %v2769 = vsel %vm2292, %v2768, %v2764
    %v2770 = vlaneseq
    %v2771 = vshrl.u32 %v2770, 7
    %v2772 = vsub.s32 %v2294, %v2771
    %v2773 = vrot.slane %v1757, %v2772
    %v2774 = vsel %vm2299, %v2773, %v2769
    %v2775 = vlaneseq
    %v2776 = vshrl.u32 %v2775, 7
    %v2777 = vsub.s32 %v2191, %v2776
    %v2778 = vrot.slane %v1760, %v2777
    %v2779 = vlaneseq
    %v2780 = vshrl.u32 %v2779, 7
    %v2781 = vsub.s32 %v2196, %v2780
    %v2782 = vrot.slane %v1763, %v2781
    %v2783 = vsel %vm2201, %v2782, %v2778
    %v2784 = vlaneseq
    %v2785 = vshrl.u32 %v2784, 7
    %v2786 = vsub.s32 %v2203, %v2785
    %v2787 = vrot.slane %v1766, %v2786
    %v2788 = vsel %vm2208, %v2787, %v2783
    %v2789 = vlaneseq
    %v2790 = vshrl.u32 %v2789, 7
    %v2791 = vsub.s32 %v2210, %v2790
    %v2792 = vrot.slane %v1769, %v2791
    %v2793 = vsel %vm2215, %v2792, %v2788
    %v2794 = vlaneseq
    %v2795 = vshrl.u32 %v2794, 7
    %v2796 = vsub.s32 %v2217, %v2795
    %v2797 = vrot.slane %v1772, %v2796
    %v2798 = vsel %vm2222, %v2797, %v2793
    %v2799 = vlaneseq
    %v2800 = vshrl.u32 %v2799, 7
    %v2801 = vsub.s32 %v2224, %v2800
    %v2802 = vrot.slane %v1775, %v2801
    %v2803 = vsel %vm2229, %v2802, %v2798
    %v2804 = vlaneseq
    %v2805 = vshrl.u32 %v2804, 7
    %v2806 = vsub.s32 %v2231, %v2805
    %v2807 = vrot.slane %v1778, %v2806
    %v2808 = vsel %vm2236, %v2807, %v2803
    %v2809 = vlaneseq
    %v2810 = vshrl.u32 %v2809, 7
    %v2811 = vsub.s32 %v2238, %v2810
    %v2812 = vrot.slane %v1781, %v2811
    %v2813 = vsel %vm2243, %v2812, %v2808
    %v2814 = vlaneseq
    %v2815 = vshrl.u32 %v2814, 7
    %v2816 = vsub.s32 %v2245, %v2815
    %v2817 = vrot.slane %v1784, %v2816
    %v2818 = vsel %vm2250, %v2817, %v2813
    %v2819 = vlaneseq
    %v2820 = vshrl.u32 %v2819, 7
    %v2821 = vsub.s32 %v2252, %v2820
    %v2822 = vrot.slane %v1787, %v2821
    %v2823 = vsel %vm2257, %v2822, %v2818
    %v2824 = vlaneseq
    %v2825 = vshrl.u32 %v2824, 7
    %v2826 = vsub.s32 %v2259, %v2825
    %v2827 = vrot.slane %v1790, %v2826
    %v2828 = vsel %vm2264, %v2827, %v2823
    %v2829 = vlaneseq
    %v2830 = vshrl.u32 %v2829, 7
    %v2831 = vsub.s32 %v2266, %v2830
    %v2832 = vrot.slane %v1793, %v2831
    %v2833 = vsel %vm2271, %v2832, %v2828
    %v2834 = vlaneseq
    %v2835 = vshrl.u32 %v2834, 7
    %v2836 = vsub.s32 %v2273, %v2835
    %v2837 = vrot.slane %v1796, %v2836
    %v2838 = vsel %vm2278, %v2837, %v2833
    %v2839 = vlaneseq
    %v2840 = vshrl.u32 %v2839, 7
    %v2841 = vsub.s32 %v2280, %v2840
    %v2842 = vrot.slane %v1799, %v2841
    %v2843 = vsel %vm2285, %v2842, %v2838
    %v2844 = vlaneseq
    %v2845 = vshrl.u32 %v2844, 7
    %v2846 = vsub.s32 %v2287, %v2845
    %v2847 = vrot.slane %v1802, %v2846
    %v2848 = vsel %vm2292, %v2847, %v2843
    %v2849 = vlaneseq
    %v2850 = vshrl.u32 %v2849, 7
    %v2851 = vsub.s32 %v2294, %v2850
    %v2852 = vrot.slane %v1805, %v2851
    %v2853 = vsel %vm2299, %v2852, %v2848
    %v2854 = vlaneseq
    %v2855 = vshrl.u32 %v2854, 7
    %v2856 = vsub.s32 %v2191, %v2855
    %v2857 = vrot.slane %v1808, %v2856
    %v2858 = vlaneseq
    %v2859 = vshrl.u32 %v2858, 7
    %v2860 = vsub.s32 %v2196, %v2859
    %v2861 = vrot.slane %v1811, %v2860
    %v2862 = vsel %vm2201, %v2861, %v2857
    %v2863 = vlaneseq
    %v2864 = vshrl.u32 %v2863, 7
    %v2865 = vsub.s32 %v2203, %v2864
    %v2866 = vrot.slane %v1814, %v2865
    %v2867 = vsel %vm2208, %v2866, %v2862
    %v2868 = vlaneseq
    %v2869 = vshrl.u32 %v2868, 7
    %v2870 = vsub.s32 %v2210, %v2869
    %v2871 = vrot.slane %v1817, %v2870
    %v2872 = vsel %vm2215, %v2871, %v2867
    %v2873 = vlaneseq
    %v2874 = vshrl.u32 %v2873, 7
    %v2875 = vsub.s32 %v2217, %v2874
    %v2876 = vrot.slane %v1820, %v2875
    %v2877 = vsel %vm2222, %v2876, %v2872
    %v2878 = vlaneseq
    %v2879 = vshrl.u32 %v2878, 7
    %v2880 = vsub.s32 %v2224, %v2879
    %v2881 = vrot.slane %v1823, %v2880
    %v2882 = vsel %vm2229, %v2881, %v2877
    %v2883 = vlaneseq
    %v2884 = vshrl.u32 %v2883, 7
    %v2885 = vsub.s32 %v2231, %v2884
    %v2886 = vrot.slane %v1826, %v2885
    %v2887 = vsel %vm2236, %v2886, %v2882
    %v2888 = vlaneseq
    %v2889 = vshrl.u32 %v2888, 7
    %v2890 = vsub.s32 %v2238, %v2889
    %v2891 = vrot.slane %v1829, %v2890
    %v2892 = vsel %vm2243, %v2891, %v2887
    %v2893 = vlaneseq
    %v2894 = vshrl.u32 %v2893, 7
    %v2895 = vsub.s32 %v2245, %v2894
    %v2896 = vrot.slane %v1832, %v2895
    %v2897 = vsel %vm2250, %v2896, %v2892
    %v2898 = vlaneseq
    %v2899 = vshrl.u32 %v2898, 7
    %v2900 = vsub.s32 %v2252, %v2899
    %v2901 = vrot.slane %v1835, %v2900
    %v2902 = vsel %vm2257, %v2901, %v2897
    %v2903 = vlaneseq
    %v2904 = vshrl.u32 %v2903, 7
    %v2905 = vsub.s32 %v2259, %v2904
    %v2906 = vrot.slane %v1838, %v2905
    %v2907 = vsel %vm2264, %v2906, %v2902
    %v2908 = vlaneseq
    %v2909 = vshrl.u32 %v2908, 7
    %v2910 = vsub.s32 %v2266, %v2909
    %v2911 = vrot.slane %v1841, %v2910
    %v2912 = vsel %vm2271, %v2911, %v2907
    %v2913 = vlaneseq
    %v2914 = vshrl.u32 %v2913, 7
    %v2915 = vsub.s32 %v2273, %v2914
    %v2916 = vrot.slane %v1844, %v2915
    %v2917 = vsel %vm2278, %v2916, %v2912
    %v2918 = vlaneseq
    %v2919 = vshrl.u32 %v2918, 7
    %v2920 = vsub.s32 %v2280, %v2919
    %v2921 = vrot.slane %v1847, %v2920
    %v2922 = vsel %vm2285, %v2921, %v2917
    %v2923 = vlaneseq
    %v2924 = vshrl.u32 %v2923, 7
    %v2925 = vsub.s32 %v2287, %v2924
    %v2926 = vrot.slane %v1850, %v2925
    %v2927 = vsel %vm2292, %v2926, %v2922
    %v2928 = vlaneseq
    %v2929 = vshrl.u32 %v2928, 7
    %v2930 = vsub.s32 %v2294, %v2929
    %v2931 = vrot.slane %v1853, %v2930
    %v2932 = vsel %vm2299, %v2931, %v2927
    %v2933 = vlaneseq
    %v2934 = vshrl.u32 %v2933, 7
    %v2935 = vsub.s32 %v2191, %v2934
    %v2936 = vrot.slane %v1856, %v2935
    %v2937 = vlaneseq
    %v2938 = vshrl.u32 %v2937, 7
    %v2939 = vsub.s32 %v2196, %v2938
    %v2940 = vrot.slane %v1859, %v2939
    %v2941 = vsel %vm2201, %v2940, %v2936
    %v2942 = vlaneseq
    %v2943 = vshrl.u32 %v2942, 7
    %v2944 = vsub.s32 %v2203, %v2943
    %v2945 = vrot.slane %v1862, %v2944
    %v2946 = vsel %vm2208, %v2945, %v2941
    %v2947 = vlaneseq
    %v2948 = vshrl.u32 %v2947, 7
    %v2949 = vsub.s32 %v2210, %v2948
    %v2950 = vrot.slane %v1865, %v2949
    %v2951 = vsel %vm2215, %v2950, %v2946
    %v2952 = vlaneseq
    %v2953 = vshrl.u32 %v2952, 7
    %v2954 = vsub.s32 %v2217, %v2953
    %v2955 = vrot.slane %v1868, %v2954
    %v2956 = vsel %vm2222, %v2955, %v2951
    %v2957 = vlaneseq
    %v2958 = vshrl.u32 %v2957, 7
    %v2959 = vsub.s32 %v2224, %v2958
    %v2960 = vrot.slane %v1871, %v2959
    %v2961 = vsel %vm2229, %v2960, %v2956
    %v2962 = vlaneseq
    %v2963 = vshrl.u32 %v2962, 7
    %v2964 = vsub.s32 %v2231, %v2963
    %v2965 = vrot.slane %v1874, %v2964
    %v2966 = vsel %vm2236, %v2965, %v2961
    %v2967 = vlaneseq
    %v2968 = vshrl.u32 %v2967, 7
    %v2969 = vsub.s32 %v2238, %v2968
    %v2970 = vrot.slane %v1877, %v2969
    %v2971 = vsel %vm2243, %v2970, %v2966
    %v2972 = vlaneseq
    %v2973 = vshrl.u32 %v2972, 7
    %v2974 = vsub.s32 %v2245, %v2973
    %v2975 = vrot.slane %v1880, %v2974
    %v2976 = vsel %vm2250, %v2975, %v2971
    %v2977 = vlaneseq
    %v2978 = vshrl.u32 %v2977, 7
    %v2979 = vsub.s32 %v2252, %v2978
    %v2980 = vrot.slane %v1883, %v2979
    %v2981 = vsel %vm2257, %v2980, %v2976
    %v2982 = vlaneseq
    %v2983 = vshrl.u32 %v2982, 7
    %v2984 = vsub.s32 %v2259, %v2983
    %v2985 = vrot.slane %v1886, %v2984
    %v2986 = vsel %vm2264, %v2985, %v2981
    %v2987 = vlaneseq
    %v2988 = vshrl.u32 %v2987, 7
    %v2989 = vsub.s32 %v2266, %v2988
    %v2990 = vrot.slane %v1889, %v2989
    %v2991 = vsel %vm2271, %v2990, %v2986
    %v2992 = vlaneseq
    %v2993 = vshrl.u32 %v2992, 7
    %v2994 = vsub.s32 %v2273, %v2993
    %v2995 = vrot.slane %v1892, %v2994
    %v2996 = vsel %vm2278, %v2995, %v2991
    %v2997 = vlaneseq
    %v2998 = vshrl.u32 %v2997, 7
    %v2999 = vsub.s32 %v2280, %v2998
    %v3000 = vrot.slane %v1895, %v2999
    %v3001 = vsel %vm2285, %v3000, %v2996
    %v3002 = vlaneseq
    %v3003 = vshrl.u32 %v3002, 7
    %v3004 = vsub.s32 %v2287, %v3003
    %v3005 = vrot.slane %v1898, %v3004
    %v3006 = vsel %vm2292, %v3005, %v3001
    %v3007 = vlaneseq
    %v3008 = vshrl.u32 %v3007, 7
    %v3009 = vsub.s32 %v2294, %v3008
    %v3010 = vrot.slane %v1901, %v3009
    %v3011 = vsel %vm2299, %v3010, %v3006
    %v3012 = vlaneseq
    %v3013 = vshrl.u32 %v3012, 7
    %v3014 = vsub.s32 %v2191, %v3013
    %v3015 = vrot.slane %v1904, %v3014
    %v3016 = vlaneseq
    %v3017 = vshrl.u32 %v3016, 7
    %v3018 = vsub.s32 %v2196, %v3017
    %v3019 = vrot.slane %v1907, %v3018
    %v3020 = vsel %vm2201, %v3019, %v3015
    %v3021 = vlaneseq
    %v3022 = vshrl.u32 %v3021, 7
    %v3023 = vsub.s32 %v2203, %v3022
    %v3024 = vrot.slane %v1910, %v3023
    %v3025 = vsel %vm2208, %v3024, %v3020
    %v3026 = vlaneseq
    %v3027 = vshrl.u32 %v3026, 7
    %v3028 = vsub.s32 %v2210, %v3027
    %v3029 = vrot.slane %v1913, %v3028
    %v3030 = vsel %vm2215, %v3029, %v3025
    %v3031 = vlaneseq
    %v3032 = vshrl.u32 %v3031, 7
    %v3033 = vsub.s32 %v2217, %v3032
    %v3034 = vrot.slane %v1916, %v3033
    %v3035 = vsel %vm2222, %v3034, %v3030
    %v3036 = vlaneseq
    %v3037 = vshrl.u32 %v3036, 7
    %v3038 = vsub.s32 %v2224, %v3037
    %v3039 = vrot.slane %v1919, %v3038
    %v3040 = vsel %vm2229, %v3039, %v3035
    %v3041 = vlaneseq
    %v3042 = vshrl.u32 %v3041, 7
    %v3043 = vsub.s32 %v2231, %v3042
    %v3044 = vrot.slane %v1922, %v3043
    %v3045 = vsel %vm2236, %v3044, %v3040
    %v3046 = vlaneseq
    %v3047 = vshrl.u32 %v3046, 7
    %v3048 = vsub.s32 %v2238, %v3047
    %v3049 = vrot.slane %v1925, %v3048
    %v3050 = vsel %vm2243, %v3049, %v3045
    %v3051 = vlaneseq
    %v3052 = vshrl.u32 %v3051, 7
    %v3053 = vsub.s32 %v2245, %v3052
    %v3054 = vrot.slane %v1928, %v3053
    %v3055 = vsel %vm2250, %v3054, %v3050
    %v3056 = vlaneseq
    %v3057 = vshrl.u32 %v3056, 7
    %v3058 = vsub.s32 %v2252, %v3057
    %v3059 = vrot.slane %v1931, %v3058
    %v3060 = vsel %vm2257, %v3059, %v3055
    %v3061 = vlaneseq
    %v3062 = vshrl.u32 %v3061, 7
    %v3063 = vsub.s32 %v2259, %v3062
    %v3064 = vrot.slane %v1934, %v3063
    %v3065 = vsel %vm2264, %v3064, %v3060
    %v3066 = vlaneseq
    %v3067 = vshrl.u32 %v3066, 7
    %v3068 = vsub.s32 %v2266, %v3067
    %v3069 = vrot.slane %v1937, %v3068
    %v3070 = vsel %vm2271, %v3069, %v3065
    %v3071 = vlaneseq
    %v3072 = vshrl.u32 %v3071, 7
    %v3073 = vsub.s32 %v2273, %v3072
    %v3074 = vrot.slane %v1940, %v3073
    %v3075 = vsel %vm2278, %v3074, %v3070
    %v3076 = vlaneseq
    %v3077 = vshrl.u32 %v3076, 7
    %v3078 = vsub.s32 %v2280, %v3077
    %v3079 = vrot.slane %v1943, %v3078
    %v3080 = vsel %vm2285, %v3079, %v3075
    %v3081 = vlaneseq
    %v3082 = vshrl.u32 %v3081, 7
    %v3083 = vsub.s32 %v2287, %v3082
    %v3084 = vrot.slane %v1946, %v3083
    %v3085 = vsel %vm2292, %v3084, %v3080
    %v3086 = vlaneseq
    %v3087 = vshrl.u32 %v3086, 7
    %v3088 = vsub.s32 %v2294, %v3087
    %v3089 = vrot.slane %v1949, %v3088
    %v3090 = vsel %vm2299, %v3089, %v3085
    %v3091 = vlaneseq
    %v3092 = vshrl.u32 %v3091, 7
    %v3093 = vsub.s32 %v2191, %v3092
    %v3094 = vrot.slane %v1952, %v3093
    %v3095 = vlaneseq
    %v3096 = vshrl.u32 %v3095, 7
    %v3097 = vsub.s32 %v2196, %v3096
    %v3098 = vrot.slane %v1955, %v3097
    %v3099 = vsel %vm2201, %v3098, %v3094
    %v3100 = vlaneseq
    %v3101 = vshrl.u32 %v3100, 7
    %v3102 = vsub.s32 %v2203, %v3101
    %v3103 = vrot.slane %v1958, %v3102
    %v3104 = vsel %vm2208, %v3103, %v3099
    %v3105 = vlaneseq
    %v3106 = vshrl.u32 %v3105, 7
    %v3107 = vsub.s32 %v2210, %v3106
    %v3108 = vrot.slane %v1961, %v3107
    %v3109 = vsel %vm2215, %v3108, %v3104
    %v3110 = vlaneseq
    %v3111 = vshrl.u32 %v3110, 7
    %v3112 = vsub.s32 %v2217, %v3111
    %v3113 = vrot.slane %v1964, %v3112
    %v3114 = vsel %vm2222, %v3113, %v3109
    %v3115 = vlaneseq
    %v3116 = vshrl.u32 %v3115, 7
    %v3117 = vsub.s32 %v2224, %v3116
    %v3118 = vrot.slane %v1967, %v3117
    %v3119 = vsel %vm2229, %v3118, %v3114
    %v3120 = vlaneseq
    %v3121 = vshrl.u32 %v3120, 7
    %v3122 = vsub.s32 %v2231, %v3121
    %v3123 = vrot.slane %v1970, %v3122
    %v3124 = vsel %vm2236, %v3123, %v3119
    %v3125 = vlaneseq
    %v3126 = vshrl.u32 %v3125, 7
    %v3127 = vsub.s32 %v2238, %v3126
    %v3128 = vrot.slane %v1973, %v3127
    %v3129 = vsel %vm2243, %v3128, %v3124
    %v3130 = vlaneseq
    %v3131 = vshrl.u32 %v3130, 7
    %v3132 = vsub.s32 %v2245, %v3131
    %v3133 = vrot.slane %v1976, %v3132
    %v3134 = vsel %vm2250, %v3133, %v3129
    %v3135 = vlaneseq
    %v3136 = vshrl.u32 %v3135, 7
    %v3137 = vsub.s32 %v2252, %v3136
    %v3138 = vrot.slane %v1979, %v3137
    %v3139 = vsel %vm2257, %v3138, %v3134
    %v3140 = vlaneseq
    %v3141 = vshrl.u32 %v3140, 7
    %v3142 = vsub.s32 %v2259, %v3141
    %v3143 = vrot.slane %v1982, %v3142
    %v3144 = vsel %vm2264, %v3143, %v3139
    %v3145 = vlaneseq
    %v3146 = vshrl.u32 %v3145, 7
    %v3147 = vsub.s32 %v2266, %v3146
    %v3148 = vrot.slane %v1985, %v3147
    %v3149 = vsel %vm2271, %v3148, %v3144
    %v3150 = vlaneseq
    %v3151 = vshrl.u32 %v3150, 7
    %v3152 = vsub.s32 %v2273, %v3151
    %v3153 = vrot.slane %v1988, %v3152
    %v3154 = vsel %vm2278, %v3153, %v3149
    %v3155 = vlaneseq
    %v3156 = vshrl.u32 %v3155, 7
    %v3157 = vsub.s32 %v2280, %v3156
    %v3158 = vrot.slane %v1991, %v3157
    %v3159 = vsel %vm2285, %v3158, %v3154
    %v3160 = vlaneseq
    %v3161 = vshrl.u32 %v3160, 7
    %v3162 = vsub.s32 %v2287, %v3161
    %v3163 = vrot.slane %v1994, %v3162
    %v3164 = vsel %vm2292, %v3163, %v3159
    %v3165 = vlaneseq
    %v3166 = vshrl.u32 %v3165, 7
    %v3167 = vsub.s32 %v2294, %v3166
    %v3168 = vrot.slane %v1997, %v3167
    %v3169 = vsel %vm2299, %v3168, %v3164
    %v3170 = vlaneseq
    %v3171 = vshrl.u32 %v3170, 7
    %v3172 = vsub.s32 %v2191, %v3171
    %v3173 = vrot.slane %v2000, %v3172
    %v3174 = vlaneseq
    %v3175 = vshrl.u32 %v3174, 7
    %v3176 = vsub.s32 %v2196, %v3175
    %v3177 = vrot.slane %v2003, %v3176
    %v3178 = vsel %vm2201, %v3177, %v3173
    %v3179 = vlaneseq
    %v3180 = vshrl.u32 %v3179, 7
    %v3181 = vsub.s32 %v2203, %v3180
    %v3182 = vrot.slane %v2006, %v3181
    %v3183 = vsel %vm2208, %v3182, %v3178
    %v3184 = vlaneseq
    %v3185 = vshrl.u32 %v3184, 7
    %v3186 = vsub.s32 %v2210, %v3185
    %v3187 = vrot.slane %v2009, %v3186
    %v3188 = vsel %vm2215, %v3187, %v3183
    %v3189 = vlaneseq
    %v3190 = vshrl.u32 %v3189, 7
    %v3191 = vsub.s32 %v2217, %v3190
    %v3192 = vrot.slane %v2012, %v3191
    %v3193 = vsel %vm2222, %v3192, %v3188
    %v3194 = vlaneseq
    %v3195 = vshrl.u32 %v3194, 7
    %v3196 = vsub.s32 %v2224, %v3195
    %v3197 = vrot.slane %v2015, %v3196
    %v3198 = vsel %vm2229, %v3197, %v3193
    %v3199 = vlaneseq
    %v3200 = vshrl.u32 %v3199, 7
    %v3201 = vsub.s32 %v2231, %v3200
    %v3202 = vrot.slane %v2018, %v3201
    %v3203 = vsel %vm2236, %v3202, %v3198
    %v3204 = vlaneseq
    %v3205 = vshrl.u32 %v3204, 7
    %v3206 = vsub.s32 %v2238, %v3205
    %v3207 = vrot.slane %v2021, %v3206
    %v3208 = vsel %vm2243, %v3207, %v3203
    %v3209 = vlaneseq
    %v3210 = vshrl.u32 %v3209, 7
    %v3211 = vsub.s32 %v2245, %v3210
    %v3212 = vrot.slane %v2024, %v3211
    %v3213 = vsel %vm2250, %v3212, %v3208
    %v3214 = vlaneseq
    %v3215 = vshrl.u32 %v3214, 7
    %v3216 = vsub.s32 %v2252, %v3215
    %v3217 = vrot.slane %v2027, %v3216
    %v3218 = vsel %vm2257, %v3217, %v3213
    %v3219 = vlaneseq
    %v3220 = vshrl.u32 %v3219, 7
    %v3221 = vsub.s32 %v2259, %v3220
    %v3222 = vrot.slane %v2030, %v3221
    %v3223 = vsel %vm2264, %v3222, %v3218
    %v3224 = vlaneseq
    %v3225 = vshrl.u32 %v3224, 7
    %v3226 = vsub.s32 %v2266, %v3225
    %v3227 = vrot.slane %v2033, %v3226
    %v3228 = vsel %vm2271, %v3227, %v3223
    %v3229 = vlaneseq
    %v3230 = vshrl.u32 %v3229, 7
    %v3231 = vsub.s32 %v2273, %v3230
    %v3232 = vrot.slane %v2036, %v3231
    %v3233 = vsel %vm2278, %v3232, %v3228
    %v3234 = vlaneseq
    %v3235 = vshrl.u32 %v3234, 7
    %v3236 = vsub.s32 %v2280, %v3235
    %v3237 = vrot.slane %v2039, %v3236
    %v3238 = vsel %vm2285, %v3237, %v3233
    %v3239 = vlaneseq
    %v3240 = vshrl.u32 %v3239, 7
    %v3241 = vsub.s32 %v2287, %v3240
    %v3242 = vrot.slane %v2042, %v3241
    %v3243 = vsel %vm2292, %v3242, %v3238
    %v3244 = vlaneseq
    %v3245 = vshrl.u32 %v3244, 7
    %v3246 = vsub.s32 %v2294, %v3245
    %v3247 = vrot.slane %v2045, %v3246
    %v3248 = vsel %vm2299, %v3247, %v3243
    %v3249 = vlaneseq
    %v3250 = vshrl.u32 %v3249, 7
    %v3251 = vsub.s32 %v2191, %v3250
    %v3252 = vrot.slane %v2048, %v3251
    %v3253 = vlaneseq
    %v3254 = vshrl.u32 %v3253, 7
    %v3255 = vsub.s32 %v2196, %v3254
    %v3256 = vrot.slane %v2051, %v3255
    %v3257 = vsel %vm2201, %v3256, %v3252
    %v3258 = vlaneseq
    %v3259 = vshrl.u32 %v3258, 7
    %v3260 = vsub.s32 %v2203, %v3259
    %v3261 = vrot.slane %v2054, %v3260
    %v3262 = vsel %vm2208, %v3261, %v3257
    %v3263 = vlaneseq
    %v3264 = vshrl.u32 %v3263, 7
    %v3265 = vsub.s32 %v2210, %v3264
    %v3266 = vrot.slane %v2057, %v3265
    %v3267 = vsel %vm2215, %v3266, %v3262
    %v3268 = vlaneseq
    %v3269 = vshrl.u32 %v3268, 7
    %v3270 = vsub.s32 %v2217, %v3269
    %v3271 = vrot.slane %v2060, %v3270
    %v3272 = vsel %vm2222, %v3271, %v3267
    %v3273 = vlaneseq
    %v3274 = vshrl.u32 %v3273, 7
    %v3275 = vsub.s32 %v2224, %v3274
    %v3276 = vrot.slane %v2063, %v3275
    %v3277 = vsel %vm2229, %v3276, %v3272
    %v3278 = vlaneseq
    %v3279 = vshrl.u32 %v3278, 7
    %v3280 = vsub.s32 %v2231, %v3279
    %v3281 = vrot.slane %v2066, %v3280
    %v3282 = vsel %vm2236, %v3281, %v3277
    %v3283 = vlaneseq
    %v3284 = vshrl.u32 %v3283, 7
    %v3285 = vsub.s32 %v2238, %v3284
    %v3286 = vrot.slane %v2069, %v3285
    %v3287 = vsel %vm2243, %v3286, %v3282
    %v3288 = vlaneseq
    %v3289 = vshrl.u32 %v3288, 7
    %v3290 = vsub.s32 %v2245, %v3289
    %v3291 = vrot.slane %v2072, %v3290
    %v3292 = vsel %vm2250, %v3291, %v3287
    %v3293 = vlaneseq
    %v3294 = vshrl.u32 %v3293, 7
    %v3295 = vsub.s32 %v2252, %v3294
    %v3296 = vrot.slane %v2075, %v3295
    %v3297 = vsel %vm2257, %v3296, %v3292
    %v3298 = vlaneseq
    %v3299 = vshrl.u32 %v3298, 7
    %v3300 = vsub.s32 %v2259, %v3299
    %v3301 = vrot.slane %v2078, %v3300
    %v3302 = vsel %vm2264, %v3301, %v3297
    %v3303 = vlaneseq
    %v3304 = vshrl.u32 %v3303, 7
    %v3305 = vsub.s32 %v2266, %v3304
    %v3306 = vrot.slane %v2081, %v3305
    %v3307 = vsel %vm2271, %v3306, %v3302
    %v3308 = vlaneseq
    %v3309 = vshrl.u32 %v3308, 7
    %v3310 = vsub.s32 %v2273, %v3309
    %v3311 = vrot.slane %v2084, %v3310
    %v3312 = vsel %vm2278, %v3311, %v3307
    %v3313 = vlaneseq
    %v3314 = vshrl.u32 %v3313, 7
    %v3315 = vsub.s32 %v2280, %v3314
    %v3316 = vrot.slane %v2087, %v3315
    %v3317 = vsel %vm2285, %v3316, %v3312
    %v3318 = vlaneseq
    %v3319 = vshrl.u32 %v3318, 7
    %v3320 = vsub.s32 %v2287, %v3319
    %v3321 = vrot.slane %v2090, %v3320
    %v3322 = vsel %vm2292, %v3321, %v3317
    %v3323 = vlaneseq
    %v3324 = vshrl.u32 %v3323, 7
    %v3325 = vsub.s32 %v2294, %v3324
    %v3326 = vrot.slane %v2093, %v3325
    %v3327 = vsel %vm2299, %v3326, %v3322
    %v3328 = vlaneseq
    %v3329 = vshrl.u32 %v3328, 7
    %v3330 = vsub.s32 %v2191, %v3329
    %v3331 = vrot.slane %v2096, %v3330
    %v3332 = vlaneseq
    %v3333 = vshrl.u32 %v3332, 7
    %v3334 = vsub.s32 %v2196, %v3333
    %v3335 = vrot.slane %v2099, %v3334
    %v3336 = vsel %vm2201, %v3335, %v3331
    %v3337 = vlaneseq
    %v3338 = vshrl.u32 %v3337, 7
    %v3339 = vsub.s32 %v2203, %v3338
    %v3340 = vrot.slane %v2102, %v3339
    %v3341 = vsel %vm2208, %v3340, %v3336
    %v3342 = vlaneseq
    %v3343 = vshrl.u32 %v3342, 7
    %v3344 = vsub.s32 %v2210, %v3343
    %v3345 = vrot.slane %v2105, %v3344
    %v3346 = vsel %vm2215, %v3345, %v3341
    %v3347 = vlaneseq
    %v3348 = vshrl.u32 %v3347, 7
    %v3349 = vsub.s32 %v2217, %v3348
    %v3350 = vrot.slane %v2108, %v3349
    %v3351 = vsel %vm2222, %v3350, %v3346
    %v3352 = vlaneseq
    %v3353 = vshrl.u32 %v3352, 7
    %v3354 = vsub.s32 %v2224, %v3353
    %v3355 = vrot.slane %v2111, %v3354
    %v3356 = vsel %vm2229, %v3355, %v3351
    %v3357 = vlaneseq
    %v3358 = vshrl.u32 %v3357, 7
    %v3359 = vsub.s32 %v2231, %v3358
    %v3360 = vrot.slane %v2114, %v3359
    %v3361 = vsel %vm2236, %v3360, %v3356
    %v3362 = vlaneseq
    %v3363 = vshrl.u32 %v3362, 7
    %v3364 = vsub.s32 %v2238, %v3363
    %v3365 = vrot.slane %v2117, %v3364
    %v3366 = vsel %vm2243, %v3365, %v3361
    %v3367 = vlaneseq
    %v3368 = vshrl.u32 %v3367, 7
    %v3369 = vsub.s32 %v2245, %v3368
    %v3370 = vrot.slane %v2120, %v3369
    %v3371 = vsel %vm2250, %v3370, %v3366
    %v3372 = vlaneseq
    %v3373 = vshrl.u32 %v3372, 7
    %v3374 = vsub.s32 %v2252, %v3373
    %v3375 = vrot.slane %v2123, %v3374
    %v3376 = vsel %vm2257, %v3375, %v3371
    %v3377 = vlaneseq
    %v3378 = vshrl.u32 %v3377, 7
    %v3379 = vsub.s32 %v2259, %v3378
    %v3380 = vrot.slane %v2126, %v3379
    %v3381 = vsel %vm2264, %v3380, %v3376
    %v3382 = vlaneseq
    %v3383 = vshrl.u32 %v3382, 7
    %v3384 = vsub.s32 %v2266, %v3383
    %v3385 = vrot.slane %v2129, %v3384
    %v3386 = vsel %vm2271, %v3385, %v3381
    %v3387 = vlaneseq
    %v3388 = vshrl.u32 %v3387, 7
    %v3389 = vsub.s32 %v2273, %v3388
    %v3390 = vrot.slane %v2132, %v3389
    %v3391 = vsel %vm2278, %v3390, %v3386
    %v3392 = vlaneseq
    %v3393 = vshrl.u32 %v3392, 7
    %v3394 = vsub.s32 %v2280, %v3393
    %v3395 = vrot.slane %v2135, %v3394
    %v3396 = vsel %vm2285, %v3395, %v3391
    %v3397 = vlaneseq
    %v3398 = vshrl.u32 %v3397, 7
    %v3399 = vsub.s32 %v2287, %v3398
    %v3400 = vrot.slane %v2138, %v3399
    %v3401 = vsel %vm2292, %v3400, %v3396
    %v3402 = vlaneseq
    %v3403 = vshrl.u32 %v3402, 7
    %v3404 = vsub.s32 %v2294, %v3403
    %v3405 = vrot.slane %v2141, %v3404
    %v3406 = vsel %vm2299, %v3405, %v3401
    %v3407 = vlaneseq
    %v3408 = vshrl.u32 %v3407, 7
    %v3409 = vsub.s32 %v2191, %v3408
    %v3410 = vrot.slane %v2144, %v3409
    %v3411 = vlaneseq
    %v3412 = vshrl.u32 %v3411, 7
    %v3413 = vsub.s32 %v2196, %v3412
    %v3414 = vrot.slane %v2147, %v3413
    %v3415 = vsel %vm2201, %v3414, %v3410
    %v3416 = vlaneseq
    %v3417 = vshrl.u32 %v3416, 7
    %v3418 = vsub.s32 %v2203, %v3417
    %v3419 = vrot.slane %v2150, %v3418
    %v3420 = vsel %vm2208, %v3419, %v3415
    %v3421 = vlaneseq
    %v3422 = vshrl.u32 %v3421, 7
    %v3423 = vsub.s32 %v2210, %v3422
    %v3424 = vrot.slane %v2153, %v3423
    %v3425 = vsel %vm2215, %v3424, %v3420
    %v3426 = vlaneseq
    %v3427 = vshrl.u32 %v3426, 7
    %v3428 = vsub.s32 %v2217, %v3427
    %v3429 = vrot.slane %v2156, %v3428
    %v3430 = vsel %vm2222, %v3429, %v3425
    %v3431 = vlaneseq
    %v3432 = vshrl.u32 %v3431, 7
    %v3433 = vsub.s32 %v2224, %v3432
    %v3434 = vrot.slane %v2159, %v3433
    %v3435 = vsel %vm2229, %v3434, %v3430
    %v3436 = vlaneseq
    %v3437 = vshrl.u32 %v3436, 7
    %v3438 = vsub.s32 %v2231, %v3437
    %v3439 = vrot.slane %v2162, %v3438
    %v3440 = vsel %vm2236, %v3439, %v3435
    %v3441 = vlaneseq
    %v3442 = vshrl.u32 %v3441, 7
    %v3443 = vsub.s32 %v2238, %v3442
    %v3444 = vrot.slane %v2165, %v3443
    %v3445 = vsel %vm2243, %v3444, %v3440
    %v3446 = vlaneseq
    %v3447 = vshrl.u32 %v3446, 7
    %v3448 = vsub.s32 %v2245, %v3447
    %v3449 = vrot.slane %v2168, %v3448
    %v3450 = vsel %vm2250, %v3449, %v3445
    %v3451 = vlaneseq
    %v3452 = vshrl.u32 %v3451, 7
    %v3453 = vsub.s32 %v2252, %v3452
    %v3454 = vrot.slane %v2171, %v3453
    %v3455 = vsel %vm2257, %v3454, %v3450
    %v3456 = vlaneseq
    %v3457 = vshrl.u32 %v3456, 7
    %v3458 = vsub.s32 %v2259, %v3457
    %v3459 = vrot.slane %v2174, %v3458
    %v3460 = vsel %vm2264, %v3459, %v3455
    %v3461 = vlaneseq
    %v3462 = vshrl.u32 %v3461, 7
    %v3463 = vsub.s32 %v2266, %v3462
    %v3464 = vrot.slane %v2177, %v3463
    %v3465 = vsel %vm2271, %v3464, %v3460
    %v3466 = vlaneseq
    %v3467 = vshrl.u32 %v3466, 7
    %v3468 = vsub.s32 %v2273, %v3467
    %v3469 = vrot.slane %v2180, %v3468
    %v3470 = vsel %vm2278, %v3469, %v3465
    %v3471 = vlaneseq
    %v3472 = vshrl.u32 %v3471, 7
    %v3473 = vsub.s32 %v2280, %v3472
    %v3474 = vrot.slane %v2183, %v3473
    %v3475 = vsel %vm2285, %v3474, %v3470
    %v3476 = vlaneseq
    %v3477 = vshrl.u32 %v3476, 7
    %v3478 = vsub.s32 %v2287, %v3477
    %v3479 = vrot.slane %v2186, %v3478
    %v3480 = vsel %vm2292, %v3479, %v3475
    %v3481 = vlaneseq
    %v3482 = vshrl.u32 %v3481, 7
    %v3483 = vsub.s32 %v2294, %v3482
    %v3484 = vrot.slane %v2189, %v3483
    %v3485 = vsel %vm2299, %v3484, %v3480
    %vm3486 = vcmask 1041409
    %v3487 = vsel %vm3486, %v2379, %v2300
    %vm3488 = vcmask 1042434
    %v3489 = vsel %vm3488, %v2458, %v3487
    %vm3490 = vcmask 1043459
    %v3491 = vsel %vm3490, %v2537, %v3489
    %vm3492 = vcmask 1044484
    %v3493 = vsel %vm3492, %v2616, %v3491
    %vm3494 = vcmask 1045509
    %v3495 = vsel %vm3494, %v2695, %v3493
    %vm3496 = vcmask 1046534
    %v3497 = vsel %vm3496, %v2774, %v3495
    %vm3498 = vcmask 1047559
    %v3499 = vsel %vm3498, %v2853, %v3497
    %v3500 = vsel %vm3486, %v3011, %v2932
    %v3501 = vsel %vm3488, %v3090, %v3500
    %v3502 = vsel %vm3490, %v3169, %v3501
    %v3503 = vsel %vm3492, %v3248, %v3502
    %v3504 = vsel %vm3494, %v3327, %v3503
    %v3505 = vsel %vm3496, %v3406, %v3504
    %v3506 = vsel %vm3498, %v3485, %v3505
    %3509 = vadd.xlane.f32.xlu0 %v3499
    %v3510 = vpop.xlane.xlu0 %3509
    %3511 = vadd.xlane.f32.xlu0 %v3506
    %v3512 = vpop.xlane.xlu0 %3511
    %v3513 = vmax.f32 %v3510, 0.0
    %v3514 = vmax.f32 %v3512, 0.0
    %v3515 = vld [vmem:[#allocation7] sm:$0xff]
    %v3516 = vmul.f32 %v3513, %v3515
    %v3517 = vmul.f32 %v3514, %v3515
    %v3518 = vrot.slane %v3516, 4
    %v3519 = vadd.f32 %v3516, %v3518
    %v3520 = vrot.slane %v3519, 2
    %v3521 = vadd.f32 %v3519, %v3520
    %v3522 = vrot.slane %v3521, 1
    %v3523 = vadd.f32 %v3521, %v3522
    %v3524 = vrot.slane %v3517, 4
    %v3525 = vadd.f32 %v3517, %v3524
    %v3526 = vrot.slane %v3525, 2
    %v3527 = vadd.f32 %v3525, %v3526
    %v3528 = vrot.slane %v3527, 1
    %v3529 = vadd.f32 %v3527, %v3528
    %v3530 = vxor.u32 %v3523, 2147483648
    %v3531 = vxor.u32 %v3529, 2147483648
    %v3532 = vmul.f32 %v3530, 1.442695
    %v3533 = vpow.pop %v3532
    %v3534 = vmul.f32 %v3531, 1.442695
    %v3535 = vpow.pop %v3534
    %v3536 = vadd.f32 %v3533, 1.0
    %v3537 = vadd.f32 %v3535, 1.0
    %v3538 = vrcp.pop %v3536
    %v3539 = vmul.f32 1.0, %v3538
    %v3540 = vrcp.pop %v3537
    %v3541 = vmul.f32 1.0, %v3540
    %3543 = vbcast.lane.b32.xlu0 %v3539, 256
    %v3544 = vpop.permute.xlu0 %3543
    %s3546 = sor.u32 256, 8
    %3547 = vbcast.lane.b32.xlu0 %v3539, %s3546
    %v3548 = vpop.permute.xlu0 %3547
    %s3550 = sor.u32 256, 16
    %3551 = vbcast.lane.b32.xlu0 %v3539, %s3550
    %v3552 = vpop.permute.xlu0 %3551
    %s3554 = sor.u32 256, 24
    %3555 = vbcast.lane.b32.xlu0 %v3539, %s3554
    %v3556 = vpop.permute.xlu0 %3555
    %s3558 = sor.u32 256, 32
    %3559 = vbcast.lane.b32.xlu0 %v3539, %s3558
    %v3560 = vpop.permute.xlu0 %3559
    %s3562 = sor.u32 256, 40
    %3563 = vbcast.lane.b32.xlu0 %v3539, %s3562
    %v3564 = vpop.permute.xlu0 %3563
    %s3566 = sor.u32 256, 48
    %3567 = vbcast.lane.b32.xlu0 %v3539, %s3566
    %v3568 = vpop.permute.xlu0 %3567
    %s3570 = sor.u32 256, 56
    %3571 = vbcast.lane.b32.xlu0 %v3539, %s3570
    %v3572 = vpop.permute.xlu0 %3571
    %s3574 = sor.u32 256, 64
    %3575 = vbcast.lane.b32.xlu0 %v3539, %s3574
    %v3576 = vpop.permute.xlu0 %3575
    %s3578 = sor.u32 256, 72
    %3579 = vbcast.lane.b32.xlu0 %v3539, %s3578
    %v3580 = vpop.permute.xlu0 %3579
    %s3582 = sor.u32 256, 80
    %3583 = vbcast.lane.b32.xlu0 %v3539, %s3582
    %v3584 = vpop.permute.xlu0 %3583
    %s3586 = sor.u32 256, 88
    %3587 = vbcast.lane.b32.xlu0 %v3539, %s3586
    %v3588 = vpop.permute.xlu0 %3587
    %s3590 = sor.u32 256, 96
    %3591 = vbcast.lane.b32.xlu0 %v3539, %s3590
    %v3592 = vpop.permute.xlu0 %3591
    %s3594 = sor.u32 256, 104
    %3595 = vbcast.lane.b32.xlu0 %v3539, %s3594
    %v3596 = vpop.permute.xlu0 %3595
    %s3598 = sor.u32 256, 112
    %3599 = vbcast.lane.b32.xlu0 %v3539, %s3598
    %v3600 = vpop.permute.xlu0 %3599
    %s3602 = sor.u32 256, 120
    %3603 = vbcast.lane.b32.xlu0 %v3539, %s3602
    %v3604 = vpop.permute.xlu0 %3603
    %3606 = vbcast.lane.b32.xlu0 %v3541, 256
    %v3607 = vpop.permute.xlu0 %3606
    %s3609 = sor.u32 256, 8
    %3610 = vbcast.lane.b32.xlu0 %v3541, %s3609
    %v3611 = vpop.permute.xlu0 %3610
    %s3613 = sor.u32 256, 16
    %3614 = vbcast.lane.b32.xlu0 %v3541, %s3613
    %v3615 = vpop.permute.xlu0 %3614
    %s3617 = sor.u32 256, 24
    %3618 = vbcast.lane.b32.xlu0 %v3541, %s3617
    %v3619 = vpop.permute.xlu0 %3618
    %s3621 = sor.u32 256, 32
    %3622 = vbcast.lane.b32.xlu0 %v3541, %s3621
    %v3623 = vpop.permute.xlu0 %3622
    %s3625 = sor.u32 256, 40
    %3626 = vbcast.lane.b32.xlu0 %v3541, %s3625
    %v3627 = vpop.permute.xlu0 %3626
    %s3629 = sor.u32 256, 48
    %3630 = vbcast.lane.b32.xlu0 %v3541, %s3629
    %v3631 = vpop.permute.xlu0 %3630
    %s3633 = sor.u32 256, 56
    %3634 = vbcast.lane.b32.xlu0 %v3541, %s3633
    %v3635 = vpop.permute.xlu0 %3634
    %s3637 = sor.u32 256, 64
    %3638 = vbcast.lane.b32.xlu0 %v3541, %s3637
    %v3639 = vpop.permute.xlu0 %3638
    %s3641 = sor.u32 256, 72
    %3642 = vbcast.lane.b32.xlu0 %v3541, %s3641
    %v3643 = vpop.permute.xlu0 %3642
    %s3645 = sor.u32 256, 80
    %3646 = vbcast.lane.b32.xlu0 %v3541, %s3645
    %v3647 = vpop.permute.xlu0 %3646
    %s3649 = sor.u32 256, 88
    %3650 = vbcast.lane.b32.xlu0 %v3541, %s3649
    %v3651 = vpop.permute.xlu0 %3650
    %s3653 = sor.u32 256, 96
    %3654 = vbcast.lane.b32.xlu0 %v3541, %s3653
    %v3655 = vpop.permute.xlu0 %3654
    %s3657 = sor.u32 256, 104
    %3658 = vbcast.lane.b32.xlu0 %v3541, %s3657
    %v3659 = vpop.permute.xlu0 %3658
    %s3661 = sor.u32 256, 112
    %3662 = vbcast.lane.b32.xlu0 %v3541, %s3661
    %v3663 = vpop.permute.xlu0 %3662
    %s3665 = sor.u32 256, 120
    %3666 = vbcast.lane.b32.xlu0 %v3541, %s3665
    %v3667 = vpop.permute.xlu0 %3666
    %v3668 = vmul.f32 %v52, %v3544
    %v3669 = vmul.f32 %v53, %v3544
    %v3670 = vmul.f32 %v54, %v3548
    %v3671 = vmul.f32 %v55, %v3548
    %v3672 = vmul.f32 %v56, %v3552
    %v3673 = vmul.f32 %v57, %v3552
    %v3674 = vmul.f32 %v58, %v3556
    %v3675 = vmul.f32 %v59, %v3556
    %v3676 = vmul.f32 %v60, %v3560
    %v3677 = vmul.f32 %v61, %v3560
    %v3678 = vmul.f32 %v62, %v3564
    %v3679 = vmul.f32 %v63, %v3564
    %v3680 = vmul.f32 %v64, %v3568
    %v3681 = vmul.f32 %v65, %v3568
    %v3682 = vmul.f32 %v66, %v3572
    %v3683 = vmul.f32 %v67, %v3572
    %v3684 = vmul.f32 %v68, %v3576
    %v3685 = vmul.f32 %v69, %v3576
    %v3686 = vmul.f32 %v70, %v3580
    %v3687 = vmul.f32 %v71, %v3580
    %v3688 = vmul.f32 %v72, %v3584
    %v3689 = vmul.f32 %v73, %v3584
    %v3690 = vmul.f32 %v74, %v3588
    %v3691 = vmul.f32 %v75, %v3588
    %v3692 = vmul.f32 %v76, %v3592
    %v3693 = vmul.f32 %v77, %v3592
    %v3694 = vmul.f32 %v78, %v3596
    %v3695 = vmul.f32 %v79, %v3596
    %v3696 = vmul.f32 %v80, %v3600
    %v3697 = vmul.f32 %v81, %v3600
    %v3698 = vmul.f32 %v82, %v3604
    %v3699 = vmul.f32 %v83, %v3604
    %v3700 = vmul.f32 %v84, %v3607
    %v3701 = vmul.f32 %v85, %v3607
    %v3702 = vmul.f32 %v86, %v3611
    %v3703 = vmul.f32 %v87, %v3611
    %v3704 = vmul.f32 %v88, %v3615
    %v3705 = vmul.f32 %v89, %v3615
    %v3706 = vmul.f32 %v90, %v3619
    %v3707 = vmul.f32 %v91, %v3619
    %v3708 = vmul.f32 %v92, %v3623
    %v3709 = vmul.f32 %v93, %v3623
    %v3710 = vmul.f32 %v94, %v3627
    %v3711 = vmul.f32 %v95, %v3627
    %v3712 = vmul.f32 %v96, %v3631
    %v3713 = vmul.f32 %v97, %v3631
    %v3714 = vmul.f32 %v98, %v3635
    %v3715 = vmul.f32 %v99, %v3635
    %v3716 = vmul.f32 %v100, %v3639
    %v3717 = vmul.f32 %v101, %v3639
    %v3718 = vmul.f32 %v102, %v3643
    %v3719 = vmul.f32 %v103, %v3643
    %v3720 = vmul.f32 %v104, %v3647
    %v3721 = vmul.f32 %v105, %v3647
    %v3722 = vmul.f32 %v106, %v3651
    %v3723 = vmul.f32 %v107, %v3651
    %v3724 = vmul.f32 %v108, %v3655
    %v3725 = vmul.f32 %v109, %v3655
    %v3726 = vmul.f32 %v110, %v3659
    %v3727 = vmul.f32 %v111, %v3659
    %v3728 = vmul.f32 %v112, %v3663
    %v3729 = vmul.f32 %v113, %v3663
    %v3730 = vmul.f32 %v114, %v3667
    %v3731 = vmul.f32 %v115, %v3667
    %3732 = vst [vmem:[#allocation8] sm:$0xff] %v3668
    %3733 = vst [vmem:[#allocation8 + $0x8] sm:$0xff] %v3669
    %3734 = vst [vmem:[#allocation8 + $0x10] sm:$0xff] %v3670
    %3735 = vst [vmem:[#allocation8 + $0x18] sm:$0xff] %v3671
    %3736 = vst [vmem:[#allocation8 + $0x20] sm:$0xff] %v3672
    %3737 = vst [vmem:[#allocation8 + $0x28] sm:$0xff] %v3673
    %3738 = vst [vmem:[#allocation8 + $0x30] sm:$0xff] %v3674
    %3739 = vst [vmem:[#allocation8 + $0x38] sm:$0xff] %v3675
    %3740 = vst [vmem:[#allocation8 + $0x40] sm:$0xff] %v3676
    %3741 = vst [vmem:[#allocation8 + $0x48] sm:$0xff] %v3677
    %3742 = vst [vmem:[#allocation8 + $0x50] sm:$0xff] %v3678
    %3743 = vst [vmem:[#allocation8 + $0x58] sm:$0xff] %v3679
    %3744 = vst [vmem:[#allocation8 + $0x60] sm:$0xff] %v3680
    %3745 = vst [vmem:[#allocation8 + $0x68] sm:$0xff] %v3681
    %3746 = vst [vmem:[#allocation8 + $0x70] sm:$0xff] %v3682
    %3747 = vst [vmem:[#allocation8 + $0x78] sm:$0xff] %v3683
    %3748 = vst [vmem:[#allocation8 + $0x80] sm:$0xff] %v3684
    %3749 = vst [vmem:[#allocation8 + $0x88] sm:$0xff] %v3685
    %3750 = vst [vmem:[#allocation8 + $0x90] sm:$0xff] %v3686
    %3751 = vst [vmem:[#allocation8 + $0x98] sm:$0xff] %v3687
    %3752 = vst [vmem:[#allocation8 + $0xa0] sm:$0xff] %v3688
    %3753 = vst [vmem:[#allocation8 + $0xa8] sm:$0xff] %v3689
    %3754 = vst [vmem:[#allocation8 + $0xb0] sm:$0xff] %v3690
    %3755 = vst [vmem:[#allocation8 + $0xb8] sm:$0xff] %v3691
    %3756 = vst [vmem:[#allocation8 + $0xc0] sm:$0xff] %v3692
    %3757 = vst [vmem:[#allocation8 + $0xc8] sm:$0xff] %v3693
    %3758 = vst [vmem:[#allocation8 + $0xd0] sm:$0xff] %v3694
    %3759 = vst [vmem:[#allocation8 + $0xd8] sm:$0xff] %v3695
    %3760 = vst [vmem:[#allocation8 + $0xe0] sm:$0xff] %v3696
    %3761 = vst [vmem:[#allocation8 + $0xe8] sm:$0xff] %v3697
    %3762 = vst [vmem:[#allocation8 + $0xf0] sm:$0xff] %v3698
    %3763 = vst [vmem:[#allocation8 + $0xf8] sm:$0xff] %v3699
    %3764 = vst [vmem:[#allocation8 + $0x100] sm:$0xff] %v3700
    %3765 = vst [vmem:[#allocation8 + $0x108] sm:$0xff] %v3701
    %3766 = vst [vmem:[#allocation8 + $0x110] sm:$0xff] %v3702
    %3767 = vst [vmem:[#allocation8 + $0x118] sm:$0xff] %v3703
    %3768 = vst [vmem:[#allocation8 + $0x120] sm:$0xff] %v3704
    %3769 = vst [vmem:[#allocation8 + $0x128] sm:$0xff] %v3705
    %3770 = vst [vmem:[#allocation8 + $0x130] sm:$0xff] %v3706
    %3771 = vst [vmem:[#allocation8 + $0x138] sm:$0xff] %v3707
    %3772 = vst [vmem:[#allocation8 + $0x140] sm:$0xff] %v3708
    %3773 = vst [vmem:[#allocation8 + $0x148] sm:$0xff] %v3709
    %3774 = vst [vmem:[#allocation8 + $0x150] sm:$0xff] %v3710
    %3775 = vst [vmem:[#allocation8 + $0x158] sm:$0xff] %v3711
    %3776 = vst [vmem:[#allocation8 + $0x160] sm:$0xff] %v3712
    %3777 = vst [vmem:[#allocation8 + $0x168] sm:$0xff] %v3713
    %3778 = vst [vmem:[#allocation8 + $0x170] sm:$0xff] %v3714
    %3779 = vst [vmem:[#allocation8 + $0x178] sm:$0xff] %v3715
    %3780 = vst [vmem:[#allocation8 + $0x180] sm:$0xff] %v3716
    %3781 = vst [vmem:[#allocation8 + $0x188] sm:$0xff] %v3717
    %3782 = vst [vmem:[#allocation8 + $0x190] sm:$0xff] %v3718
    %3783 = vst [vmem:[#allocation8 + $0x198] sm:$0xff] %v3719
    %3784 = vst [vmem:[#allocation8 + $0x1a0] sm:$0xff] %v3720
    %3785 = vst [vmem:[#allocation8 + $0x1a8] sm:$0xff] %v3721
    %3786 = vst [vmem:[#allocation8 + $0x1b0] sm:$0xff] %v3722
    %3787 = vst [vmem:[#allocation8 + $0x1b8] sm:$0xff] %v3723
    %3788 = vst [vmem:[#allocation8 + $0x1c0] sm:$0xff] %v3724
    %3789 = vst [vmem:[#allocation8 + $0x1c8] sm:$0xff] %v3725
    %3790 = vst [vmem:[#allocation8 + $0x1d0] sm:$0xff] %v3726
    %3791 = vst [vmem:[#allocation8 + $0x1d8] sm:$0xff] %v3727
    %3792 = vst [vmem:[#allocation8 + $0x1e0] sm:$0xff] %v3728
    %3793 = vst [vmem:[#allocation8 + $0x1e8] sm:$0xff] %v3729
    %3794 = vst [vmem:[#allocation8 + $0x1f0] sm:$0xff] %v3730
    %3795 = vst [vmem:[#allocation8 + $0x1f8] sm:$0xff] %v3731
    // Predicated region
    $region26: #{tpu_custom_call.1} parent=1 // pred_check
      _
    $region27: #{tpu_custom_call.1} parent=1 // pred_check_branch
      %3797 = sbr.rel (0) target = $region29
    $region28: #{tpu_custom_call.1} parent=1 // pred_region
      %s3799 = ssub.s32 8192, 8192
      %3800 = vsyncadd [#allocation4], %s3799
      %s3801 = sshll.u32 [#allocation8], 4
      %s3802 = int_to_ptr.vmem [resolvable:$true] %s3801
      %3807 = dma.vmem_to_hbm [thread:$0]  %s3802, 8192, %s3, [#allocation4], 256, 256, 16
    $region29: #{tpu_custom_call.1} parent=1 // pred_fallthru
      _
    // Predicated region
    $region30: #{tpu_custom_call.1} parent=1 // pred_check
      _
    $region31: #{tpu_custom_call.1} parent=1 // pred_check_branch
      %3809 = sbr.rel (0) target = $region33
    $region32: #{tpu_custom_call.1} parent=1 // pred_region
      %3810 = dma.done [#allocation4], 8192
    $region33: #{tpu_custom_call.1} parent=1 // pred_fallthru
      _
    %3811 = vsyncpa [#allocation3], 1
    %3812 = vsyncpa [#allocation6], 1
    %3813 = vsyncpa [#allocation4], 1

</llo_original>
